<compile_context>
chip_gen: v5e
topology: v5e:2x2
jax: 0.10.0
libtpu: 0.0.40
codegen_flags: <defaults>
</compile_context>

<pallas_src>
import functools
import math

import jax
import jax.numpy as jnp
from jax import lax
from jax.experimental import pallas as pl
from jax.experimental.pallas import tpu as pltpu


def _layer_dims(input_shape, latent_shape):
    enc = [(input_shape, 64), (64, 32), (32, 16), (16, 8), (8, latent_shape)]
    dec = [(latent_shape, 8), (8, 16), (16, 32), (32, 64), (64, input_shape)]
    dims = enc + dec
    acts = ["leaky", "leaky", "leaky", "leaky", "none",
            "leaky", "leaky", "leaky", "leaky", "sigmoid"]
    return dims, acts


def init_params(key, input_shape, latent_shape):
    """PyTorch-convention params: W of shape (out, in), b of shape (out,)."""
    dims, acts = _layer_dims(input_shape, latent_shape)
    params = []
    for (d_in, d_out) in dims:
        key, kw, kb = jax.random.split(key, 3)
        bound = 1.0 / math.sqrt(d_in)
        w = jax.random.uniform(kw, (d_out, d_in), jnp.float32, -bound, bound)
        b = jax.random.uniform(kb, (d_out,), jnp.float32, -bound, bound)
        params.append((w, b))
    return params, acts


def _pad8(n):
    return max(8, ((n + 7) // 8) * 8)


def _round_up(n, m):
    return ((n + m - 1) // m) * m


def autoencoder_kernel(x_ref, w_ref, b_ref, out_ref, *, dims, acts, bf16_matmul):
    """All 10 layers fused on one VMEM-resident batch tile.

    Feature-major layout: h is (features, tb) so every matmul has a full lane
    dimension (tb, a multiple of 128) and every HBM-facing load/store is
    lane-dense. Each layer computes h = W @ h + b using a static per-layer
    slice of the zero-padded parameter slab; padded rows/cols stay exactly
    zero through LeakyReLU so they never contaminate real features.
    """
    h = x_ref[...]                          # (d_in0, tb) f32, no feature padding
    ri = dims[0][0]                         # first layer contracts the true D
    for i, ((d_in, d_out), act) in enumerate(zip(dims, acts)):
        ro = _pad8(d_out)
        w = w_ref[i, :ro, :ri]              # compile-time slice of the slab
        b = b_ref[i, :ro]                   # (ro, 1) f32, lane-broadcast bias
        if bf16_matmul:
            # Weights already bf16 (pre-cast on host); f32 accumulation on MXU.
            h = jnp.dot(w, h.astype(jnp.bfloat16),
                        preferred_element_type=jnp.float32)
        else:
            h = jnp.dot(w, h, preferred_element_type=jnp.float32)
        h = h + b
        if act == "leaky":
            h = jnp.where(h > 0, h, 0.01 * h)                        # VPU, f32
        elif act == "sigmoid":
            # exp on EUP; exact reciprocal for the strict f32 check, pure-EUP
            # approx reciprocal on the bf16 fast path.
            h = pl.reciprocal(1.0 + jnp.exp(-h), approx=bf16_matmul)
        # act == "none": latent layer passthrough
        ri = ro
    d_final = dims[-1][1]
    out_ref[...] = h[:d_final].astype(out_ref.dtype)


def _pick_tb(B, tb, max_tb=2048):
    if tb is None:
        # >= 2 grid steps whenever B > 128 (keeps both v7x TensorCores fed),
        # capped so very large B still yields many pipelined steps.
        half = -(-B // 2)
        tb = min(max_tb, max(128, _round_up(half, 128)))
    else:
        tb = max(128, _round_up(tb, 128))
    return tb


def autoencoder_forward(x, params, acts, *, tb=None, bf16_matmul=True):
    """x: (B, input_shape) f32 -> (B, input_shape) reconstruction."""
    B, D = x.shape
    n_layers = len(params)
    dims = [(int(w.shape[1]), int(w.shape[0])) for (w, _) in params]
    assert dims[-1][1] == D and dims[0][0] == D

    # Padded feature dim shared by the parameter slab (sublane-aligned).
    maxd = max(_pad8(d) for pair in dims for d in pair)

    tb = _pick_tb(B, tb)
    num_tiles = -(-B // tb)
    b_pad = num_tiles * tb

    # Feature-major input; pad only the batch tail (zeros -> sigmoid(0.5) tail
    # columns are sliced off after the kernel). No padded feature slab.
    x_t = x.T.astype(jnp.float32)
    if b_pad != B:
        x_t = jnp.pad(x_t, ((0, 0), (0, b_pad - B)))

    # Zero-padded parameter slabs; constant index_map -> DMA'd once, reused.
    w_slab = jnp.zeros((n_layers, maxd, maxd), jnp.float32)
    b_slab = jnp.zeros((n_layers, maxd, 1), jnp.float32)
    for i, (w, b) in enumerate(params):
        d_out, d_in = w.shape
        w_slab = w_slab.at[i, :d_out, :d_in].set(w.astype(jnp.float32))
        b_slab = b_slab.at[i, :d_out, 0].set(b.astype(jnp.float32))
    if bf16_matmul:
        w_slab = w_slab.astype(jnp.bfloat16)   # pre-cast once on host

    flops = 2 * b_pad * sum(di * do for (di, do) in dims)
    cost = pl.CostEstimate(
        flops=flops,
        transcendentals=b_pad * D,   # exp in the final sigmoid
        bytes_accessed=(4 * 2 * D * b_pad
                        + int(w_slab.size) * w_slab.dtype.itemsize
                        + int(b_slab.size) * 4),
    )

    kernel = functools.partial(
        autoencoder_kernel, dims=tuple(dims), acts=tuple(acts),
        bf16_matmul=bf16_matmul)

    out_fm = pl.pallas_call(
        kernel,
        out_shape=jax.ShapeDtypeStruct((D, b_pad), jnp.float32),
        grid=(num_tiles,),
        in_specs=[
            # Activations: lane-dense (tb multiple of 128), batch on lanes.
            pl.BlockSpec((D, tb), lambda i: (0, i)),
            # Constant-index parameter slabs: DMA'd once, reused each step.
            pl.BlockSpec((n_layers, maxd, maxd), lambda i: (0, 0, 0)),
            pl.BlockSpec((n_layers, maxd, 1), lambda i: (0, 0, 0)),
        ],
        out_specs=pl.BlockSpec((D, tb), lambda i: (0, i)),
        compiler_params=pltpu.CompilerParams(
            dimension_semantics=("parallel",)),   # shards steps across v7x's 2 TCs
        cost_estimate=cost,
    )(x_t, w_slab, b_slab)

    # TODO(synk): a feature-major consumer could skip this final transpose.
    return out_fm[:, :B].T


def reference_forward(x, params, acts):
    """Pure-JAX reference in PyTorch layout: y = x @ W.T + b."""
    h = x
    for (w, b), act in zip(params, acts):
        h = jnp.dot(h, w.T, precision=lax.Precision.HIGHEST) + b
        if act == "leaky":
            h = jnp.where(h > 0, h, 0.01 * h)
        elif act == "sigmoid":
            h = 1.0 / (1.0 + jnp.exp(-h))
    return h


if __name__ == "__main__":
    # TODO(synk): only the forward pass is implemented; the module's Adam optimizer,
    # MSELoss and LR scheduler are training-time machinery, not part of forward().
    input_shape = 32
    latent_shape = 4
    batch = 500          # non-multiple of the tile to exercise the padded tail

    key = jax.random.PRNGKey(0)
    key, kx = jax.random.split(key)
    x = jax.random.normal(kx, (batch, input_shape), jnp.float32)

    params, acts = init_params(key, input_shape, latent_shape)
    ref = reference_forward(x, params, acts)

    # Strict f32 path (exact reciprocal sigmoid, f32 MXU inputs).
    out_f32 = jax.block_until_ready(
        autoencoder_forward(x, params, acts, bf16_matmul=False))
    assert out_f32.shape == (batch, input_shape)
    assert jnp.allclose(out_f32, ref, atol=1e-4, rtol=1e-4)

    # Default fast path: pre-cast bf16 weights, f32 accumulation (v5e/v6e/v7x MXU).
    out_bf16 = jax.block_until_ready(autoencoder_forward(x, params, acts))
    assert out_bf16.shape == (batch, input_shape)
    assert jnp.allclose(out_bf16, ref, atol=5e-2, rtol=5e-2)

    print("KERNEL_OK")
</pallas_src>

<mosaic_0001>
module attributes {stable_mosaic.version = 11 : i64} {
  func.func @autoencoder_kernel(%arg0: i32, %arg1: memref<32x256xf32, #tpu.memory_space<vmem>>, %arg2: memref<10x64x64xf32, #tpu.memory_space<vmem>>, %arg3: memref<10x64x1xf32, #tpu.memory_space<vmem>>, %arg4: memref<32x256xf32, #tpu.memory_space<vmem>>) attributes {dimension_semantics = [#tpu.dimension_semantics<parallel>], iteration_bounds = array<i64: 2>, scalar_prefetch = 0 : i64, scratch_operands = 0 : i64, tpu.core_type = #tpu.core_type<tc>, window_params = [{transform_indices = @transform_0, window_bounds = array<i64: 32, 256>}, {pipeline_mode = #tpu.pipeline_mode<synchronous>, transform_indices = @transform_1, window_bounds = array<i64: 10, 64, 64>}, {pipeline_mode = #tpu.pipeline_mode<synchronous>, transform_indices = @transform_2, window_bounds = array<i64: 10, 64, 1>}, {transform_indices = @transform_3, window_bounds = array<i64: 32, 256>}]} {
    %c0 = arith.constant 0 : index
    %c0_0 = arith.constant 0 : index
    %0 = vector.load %arg1[%c0, %c0_0] : memref<32x256xf32, #tpu.memory_space<vmem>>, vector<32x256xf32>
    %c0_1 = arith.constant 0 : index
    %c0_2 = arith.constant 0 : index
    %c0_3 = arith.constant 0 : index
    %1 = vector.load %arg2[%c0_1, %c0_2, %c0_3] : memref<10x64x64xf32, #tpu.memory_space<vmem>>, vector<1x64x32xf32>
    %2 = vector.shape_cast %1 : vector<1x64x32xf32> to vector<64x32xf32>
    %c0_4 = arith.constant 0 : index
    %c0_5 = arith.constant 0 : index
    %c0_6 = arith.constant 0 : index
    %3 = vector.load %arg3[%c0_4, %c0_5, %c0_6] : memref<10x64x1xf32, #tpu.memory_space<vmem>>, vector<1x64x1xf32>
    %4 = vector.shape_cast %3 : vector<1x64x1xf32> to vector<64x1xf32>
    %cst = arith.constant dense<0.000000e+00> : vector<64x256xf32>
    %5 = tpu.matmul %2, %0, %cst {dimension_numbers = #tpu.dot_dimension_numbers<[1], [0], [0], [1], [0, 0, 1, 1], [], []>} : vector<64x32xf32>, vector<32x256xf32>, vector<64x256xf32> -> vector<64x256xf32>
    %6 = vector.broadcast %4 : vector<64x1xf32> to vector<64x256xf32>
    %7 = arith.addf %5, %6 : vector<64x256xf32>
    %cst_7 = arith.constant 0.000000e+00 : f32
    %8 = vector.broadcast %cst_7 : f32 to vector<64x256xf32>
    %9 = arith.cmpf ogt, %7, %8 : vector<64x256xf32>
    %cst_8 = arith.constant 0.00999999977 : f32
    %10 = vector.broadcast %cst_8 : f32 to vector<64x256xf32>
    %11 = arith.mulf %10, %7 : vector<64x256xf32>
    %12 = arith.select %9, %7, %11 : vector<64x256xi1>, vector<64x256xf32>
    %c1 = arith.constant 1 : index
    %c0_9 = arith.constant 0 : index
    %c0_10 = arith.constant 0 : index
    %13 = vector.load %arg2[%c1, %c0_9, %c0_10] : memref<10x64x64xf32, #tpu.memory_space<vmem>>, vector<1x32x64xf32>
    %14 = vector.shape_cast %13 : vector<1x32x64xf32> to vector<32x64xf32>
    %c1_11 = arith.constant 1 : index
    %c0_12 = arith.constant 0 : index
    %c0_13 = arith.constant 0 : index
    %15 = vector.load %arg3[%c1_11, %c0_12, %c0_13] : memref<10x64x1xf32, #tpu.memory_space<vmem>>, vector<1x32x1xf32>
    %16 = vector.shape_cast %15 : vector<1x32x1xf32> to vector<32x1xf32>
    %cst_14 = arith.constant dense<0.000000e+00> : vector<32x256xf32>
    %17 = tpu.matmul %14, %12, %cst_14 {dimension_numbers = #tpu.dot_dimension_numbers<[1], [0], [0], [1], [0, 0, 1, 1], [], []>} : vector<32x64xf32>, vector<64x256xf32>, vector<32x256xf32> -> vector<32x256xf32>
    %18 = vector.broadcast %16 : vector<32x1xf32> to vector<32x256xf32>
    %19 = arith.addf %17, %18 : vector<32x256xf32>
    %cst_15 = arith.constant 0.000000e+00 : f32
    %20 = vector.broadcast %cst_15 : f32 to vector<32x256xf32>
    %21 = arith.cmpf ogt, %19, %20 : vector<32x256xf32>
    %cst_16 = arith.constant 0.00999999977 : f32
    %22 = vector.broadcast %cst_16 : f32 to vector<32x256xf32>
    %23 = arith.mulf %22, %19 : vector<32x256xf32>
    %24 = arith.select %21, %19, %23 : vector<32x256xi1>, vector<32x256xf32>
    %c2 = arith.constant 2 : index
    %c0_17 = arith.constant 0 : index
    %c0_18 = arith.constant 0 : index
    %25 = vector.load %arg2[%c2, %c0_17, %c0_18] : memref<10x64x64xf32, #tpu.memory_space<vmem>>, vector<1x16x32xf32>
    %26 = vector.shape_cast %25 : vector<1x16x32xf32> to vector<16x32xf32>
    %c2_19 = arith.constant 2 : index
    %c0_20 = arith.constant 0 : index
    %c0_21 = arith.constant 0 : index
    %27 = vector.load %arg3[%c2_19, %c0_20, %c0_21] : memref<10x64x1xf32, #tpu.memory_space<vmem>>, vector<1x16x1xf32>
    %28 = vector.shape_cast %27 : vector<1x16x1xf32> to vector<16x1xf32>
    %cst_22 = arith.constant dense<0.000000e+00> : vector<16x256xf32>
    %29 = tpu.matmul %26, %24, %cst_22 {dimension_numbers = #tpu.dot_dimension_numbers<[1], [0], [0], [1], [0, 0, 1, 1], [], []>} : vector<16x32xf32>, vector<32x256xf32>, vector<16x256xf32> -> vector<16x256xf32>
    %30 = vector.broadcast %28 : vector<16x1xf32> to vector<16x256xf32>
    %31 = arith.addf %29, %30 : vector<16x256xf32>
    %cst_23 = arith.constant 0.000000e+00 : f32
    %32 = vector.broadcast %cst_23 : f32 to vector<16x256xf32>
    %33 = arith.cmpf ogt, %31, %32 : vector<16x256xf32>
    %cst_24 = arith.constant 0.00999999977 : f32
    %34 = vector.broadcast %cst_24 : f32 to vector<16x256xf32>
    %35 = arith.mulf %34, %31 : vector<16x256xf32>
    %36 = arith.select %33, %31, %35 : vector<16x256xi1>, vector<16x256xf32>
    %c3 = arith.constant 3 : index
    %c0_25 = arith.constant 0 : index
    %c0_26 = arith.constant 0 : index
    %37 = vector.load %arg2[%c3, %c0_25, %c0_26] : memref<10x64x64xf32, #tpu.memory_space<vmem>>, vector<1x8x16xf32>
    %38 = vector.shape_cast %37 : vector<1x8x16xf32> to vector<8x16xf32>
    %c3_27 = arith.constant 3 : index
    %c0_28 = arith.constant 0 : index
    %c0_29 = arith.constant 0 : index
    %39 = vector.load %arg3[%c3_27, %c0_28, %c0_29] : memref<10x64x1xf32, #tpu.memory_space<vmem>>, vector<1x8x1xf32>
    %40 = vector.shape_cast %39 : vector<1x8x1xf32> to vector<8x1xf32>
    %cst_30 = arith.constant dense<0.000000e+00> : vector<8x256xf32>
    %41 = tpu.matmul %38, %36, %cst_30 {dimension_numbers = #tpu.dot_dimension_numbers<[1], [0], [0], [1], [0, 0, 1, 1], [], []>} : vector<8x16xf32>, vector<16x256xf32>, vector<8x256xf32> -> vector<8x256xf32>
    %42 = vector.broadcast %40 : vector<8x1xf32> to vector<8x256xf32>
    %43 = arith.addf %41, %42 : vector<8x256xf32>
    %cst_31 = arith.constant 0.000000e+00 : f32
    %44 = vector.broadcast %cst_31 : f32 to vector<8x256xf32>
    %45 = arith.cmpf ogt, %43, %44 : vector<8x256xf32>
    %cst_32 = arith.constant 0.00999999977 : f32
    %46 = vector.broadcast %cst_32 : f32 to vector<8x256xf32>
    %47 = arith.mulf %46, %43 : vector<8x256xf32>
    %48 = arith.select %45, %43, %47 : vector<8x256xi1>, vector<8x256xf32>
    %c4 = arith.constant 4 : index
    %c0_33 = arith.constant 0 : index
    %c0_34 = arith.constant 0 : index
    %49 = vector.load %arg2[%c4, %c0_33, %c0_34] : memref<10x64x64xf32, #tpu.memory_space<vmem>>, vector<1x8x8xf32>
    %50 = vector.shape_cast %49 : vector<1x8x8xf32> to vector<8x8xf32>
    %c4_35 = arith.constant 4 : index
    %c0_36 = arith.constant 0 : index
    %c0_37 = arith.constant 0 : index
    %51 = vector.load %arg3[%c4_35, %c0_36, %c0_37] : memref<10x64x1xf32, #tpu.memory_space<vmem>>, vector<1x8x1xf32>
    %52 = vector.shape_cast %51 : vector<1x8x1xf32> to vector<8x1xf32>
    %cst_38 = arith.constant dense<0.000000e+00> : vector<8x256xf32>
    %53 = tpu.matmul %50, %48, %cst_38 {dimension_numbers = #tpu.dot_dimension_numbers<[1], [0], [0], [1], [0, 0, 1, 1], [], []>} : vector<8x8xf32>, vector<8x256xf32>, vector<8x256xf32> -> vector<8x256xf32>
    %54 = vector.broadcast %52 : vector<8x1xf32> to vector<8x256xf32>
    %55 = arith.addf %53, %54 : vector<8x256xf32>
    %c5 = arith.constant 5 : index
    %c0_39 = arith.constant 0 : index
    %c0_40 = arith.constant 0 : index
    %56 = vector.load %arg2[%c5, %c0_39, %c0_40] : memref<10x64x64xf32, #tpu.memory_space<vmem>>, vector<1x8x8xf32>
    %57 = vector.shape_cast %56 : vector<1x8x8xf32> to vector<8x8xf32>
    %c5_41 = arith.constant 5 : index
    %c0_42 = arith.constant 0 : index
    %c0_43 = arith.constant 0 : index
    %58 = vector.load %arg3[%c5_41, %c0_42, %c0_43] : memref<10x64x1xf32, #tpu.memory_space<vmem>>, vector<1x8x1xf32>
    %59 = vector.shape_cast %58 : vector<1x8x1xf32> to vector<8x1xf32>
    %cst_44 = arith.constant dense<0.000000e+00> : vector<8x256xf32>
    %60 = tpu.matmul %57, %55, %cst_44 {dimension_numbers = #tpu.dot_dimension_numbers<[1], [0], [0], [1], [0, 0, 1, 1], [], []>} : vector<8x8xf32>, vector<8x256xf32>, vector<8x256xf32> -> vector<8x256xf32>
    %61 = vector.broadcast %59 : vector<8x1xf32> to vector<8x256xf32>
    %62 = arith.addf %60, %61 : vector<8x256xf32>
    %cst_45 = arith.constant 0.000000e+00 : f32
    %63 = vector.broadcast %cst_45 : f32 to vector<8x256xf32>
    %64 = arith.cmpf ogt, %62, %63 : vector<8x256xf32>
    %cst_46 = arith.constant 0.00999999977 : f32
    %65 = vector.broadcast %cst_46 : f32 to vector<8x256xf32>
    %66 = arith.mulf %65, %62 : vector<8x256xf32>
    %67 = arith.select %64, %62, %66 : vector<8x256xi1>, vector<8x256xf32>
    %c6 = arith.constant 6 : index
    %c0_47 = arith.constant 0 : index
    %c0_48 = arith.constant 0 : index
    %68 = vector.load %arg2[%c6, %c0_47, %c0_48] : memref<10x64x64xf32, #tpu.memory_space<vmem>>, vector<1x16x8xf32>
    %69 = vector.shape_cast %68 : vector<1x16x8xf32> to vector<16x8xf32>
    %c6_49 = arith.constant 6 : index
    %c0_50 = arith.constant 0 : index
    %c0_51 = arith.constant 0 : index
    %70 = vector.load %arg3[%c6_49, %c0_50, %c0_51] : memref<10x64x1xf32, #tpu.memory_space<vmem>>, vector<1x16x1xf32>
    %71 = vector.shape_cast %70 : vector<1x16x1xf32> to vector<16x1xf32>
    %cst_52 = arith.constant dense<0.000000e+00> : vector<16x256xf32>
    %72 = tpu.matmul %69, %67, %cst_52 {dimension_numbers = #tpu.dot_dimension_numbers<[1], [0], [0], [1], [0, 0, 1, 1], [], []>} : vector<16x8xf32>, vector<8x256xf32>, vector<16x256xf32> -> vector<16x256xf32>
    %73 = vector.broadcast %71 : vector<16x1xf32> to vector<16x256xf32>
    %74 = arith.addf %72, %73 : vector<16x256xf32>
    %cst_53 = arith.constant 0.000000e+00 : f32
    %75 = vector.broadcast %cst_53 : f32 to vector<16x256xf32>
    %76 = arith.cmpf ogt, %74, %75 : vector<16x256xf32>
    %cst_54 = arith.constant 0.00999999977 : f32
    %77 = vector.broadcast %cst_54 : f32 to vector<16x256xf32>
    %78 = arith.mulf %77, %74 : vector<16x256xf32>
    %79 = arith.select %76, %74, %78 : vector<16x256xi1>, vector<16x256xf32>
    %c7 = arith.constant 7 : index
    %c0_55 = arith.constant 0 : index
    %c0_56 = arith.constant 0 : index
    %80 = vector.load %arg2[%c7, %c0_55, %c0_56] : memref<10x64x64xf32, #tpu.memory_space<vmem>>, vector<1x32x16xf32>
    %81 = vector.shape_cast %80 : vector<1x32x16xf32> to vector<32x16xf32>
    %c7_57 = arith.constant 7 : index
    %c0_58 = arith.constant 0 : index
    %c0_59 = arith.constant 0 : index
    %82 = vector.load %arg3[%c7_57, %c0_58, %c0_59] : memref<10x64x1xf32, #tpu.memory_space<vmem>>, vector<1x32x1xf32>
    %83 = vector.shape_cast %82 : vector<1x32x1xf32> to vector<32x1xf32>
    %cst_60 = arith.constant dense<0.000000e+00> : vector<32x256xf32>
    %84 = tpu.matmul %81, %79, %cst_60 {dimension_numbers = #tpu.dot_dimension_numbers<[1], [0], [0], [1], [0, 0, 1, 1], [], []>} : vector<32x16xf32>, vector<16x256xf32>, vector<32x256xf32> -> vector<32x256xf32>
    %85 = vector.broadcast %83 : vector<32x1xf32> to vector<32x256xf32>
    %86 = arith.addf %84, %85 : vector<32x256xf32>
    %cst_61 = arith.constant 0.000000e+00 : f32
    %87 = vector.broadcast %cst_61 : f32 to vector<32x256xf32>
    %88 = arith.cmpf ogt, %86, %87 : vector<32x256xf32>
    %cst_62 = arith.constant 0.00999999977 : f32
    %89 = vector.broadcast %cst_62 : f32 to vector<32x256xf32>
    %90 = arith.mulf %89, %86 : vector<32x256xf32>
    %91 = arith.select %88, %86, %90 : vector<32x256xi1>, vector<32x256xf32>
    %c8 = arith.constant 8 : index
    %c0_63 = arith.constant 0 : index
    %c0_64 = arith.constant 0 : index
    %92 = vector.load %arg2[%c8, %c0_63, %c0_64] : memref<10x64x64xf32, #tpu.memory_space<vmem>>, vector<1x64x32xf32>
    %93 = vector.shape_cast %92 : vector<1x64x32xf32> to vector<64x32xf32>
    %c8_65 = arith.constant 8 : index
    %c0_66 = arith.constant 0 : index
    %c0_67 = arith.constant 0 : index
    %94 = vector.load %arg3[%c8_65, %c0_66, %c0_67] : memref<10x64x1xf32, #tpu.memory_space<vmem>>, vector<1x64x1xf32>
    %95 = vector.shape_cast %94 : vector<1x64x1xf32> to vector<64x1xf32>
    %cst_68 = arith.constant dense<0.000000e+00> : vector<64x256xf32>
    %96 = tpu.matmul %93, %91, %cst_68 {dimension_numbers = #tpu.dot_dimension_numbers<[1], [0], [0], [1], [0, 0, 1, 1], [], []>} : vector<64x32xf32>, vector<32x256xf32>, vector<64x256xf32> -> vector<64x256xf32>
    %97 = vector.broadcast %95 : vector<64x1xf32> to vector<64x256xf32>
    %98 = arith.addf %96, %97 : vector<64x256xf32>
    %cst_69 = arith.constant 0.000000e+00 : f32
    %99 = vector.broadcast %cst_69 : f32 to vector<64x256xf32>
    %100 = arith.cmpf ogt, %98, %99 : vector<64x256xf32>
    %cst_70 = arith.constant 0.00999999977 : f32
    %101 = vector.broadcast %cst_70 : f32 to vector<64x256xf32>
    %102 = arith.mulf %101, %98 : vector<64x256xf32>
    %103 = arith.select %100, %98, %102 : vector<64x256xi1>, vector<64x256xf32>
    %c9 = arith.constant 9 : index
    %c0_71 = arith.constant 0 : index
    %c0_72 = arith.constant 0 : index
    %104 = vector.load %arg2[%c9, %c0_71, %c0_72] : memref<10x64x64xf32, #tpu.memory_space<vmem>>, vector<1x32x64xf32>
    %105 = vector.shape_cast %104 : vector<1x32x64xf32> to vector<32x64xf32>
    %c9_73 = arith.constant 9 : index
    %c0_74 = arith.constant 0 : index
    %c0_75 = arith.constant 0 : index
    %106 = vector.load %arg3[%c9_73, %c0_74, %c0_75] : memref<10x64x1xf32, #tpu.memory_space<vmem>>, vector<1x32x1xf32>
    %107 = vector.shape_cast %106 : vector<1x32x1xf32> to vector<32x1xf32>
    %cst_76 = arith.constant dense<0.000000e+00> : vector<32x256xf32>
    %108 = tpu.matmul %105, %103, %cst_76 {dimension_numbers = #tpu.dot_dimension_numbers<[1], [0], [0], [1], [0, 0, 1, 1], [], []>} : vector<32x64xf32>, vector<64x256xf32>, vector<32x256xf32> -> vector<32x256xf32>
    %109 = vector.broadcast %107 : vector<32x1xf32> to vector<32x256xf32>
    %110 = arith.addf %108, %109 : vector<32x256xf32>
    %cst_77 = arith.constant 0.000000e+00 : f32
    %111 = vector.broadcast %cst_77 : f32 to vector<32x256xf32>
    %112 = arith.subf %111, %110 : vector<32x256xf32>
    %113 = math.exp %112 : vector<32x256xf32>
    %cst_78 = arith.constant 1.000000e+00 : f32
    %114 = vector.broadcast %cst_78 : f32 to vector<32x256xf32>
    %115 = arith.addf %114, %113 : vector<32x256xf32>
    %116 = tpu.reciprocal %115 : vector<32x256xf32> -> vector<32x256xf32>
    %c0_79 = arith.constant 0 : index
    %c0_80 = arith.constant 0 : index
    %117 = vector.load %arg4[%c0_79, %c0_80] : memref<32x256xf32, #tpu.memory_space<vmem>>, vector<32x256xf32>
    tpu.vector_store %arg4[%c0_79, %c0_80], %116 {strides = array<i32>} : memref<32x256xf32, #tpu.memory_space<vmem>>, vector<32x256xf32>,
    return
  }
  func.func @transform_0(%arg0: i32) -> (i32, i32) {
    %c0_i32 = arith.constant 0 : i32
    %c0_i32_0 = arith.constant 0 : i32
    return %c0_i32, %arg0 : i32, i32
  }
  func.func @transform_1(%arg0: i32) -> (i32, i32, i32) {
    %c0_i32 = arith.constant 0 : i32
    %c0_i32_0 = arith.constant 0 : i32
    %c0_i32_1 = arith.constant 0 : i32
    %c0_i32_2 = arith.constant 0 : i32
    return %c0_i32, %c0_i32_0, %c0_i32_1 : i32, i32, i32
  }
  func.func @transform_2(%arg0: i32) -> (i32, i32, i32) {
    %c0_i32 = arith.constant 0 : i32
    %c0_i32_0 = arith.constant 0 : i32
    %c0_i32_1 = arith.constant 0 : i32
    %c0_i32_2 = arith.constant 0 : i32
    return %c0_i32, %c0_i32_0, %c0_i32_1 : i32, i32, i32
  }
  func.func @transform_3(%arg0: i32) -> (i32, i32) {
    %c0_i32 = arith.constant 0 : i32
    %c0_i32_0 = arith.constant 0 : i32
    return %c0_i32, %arg0 : i32, i32
  }
}

</mosaic_0001>

<llo_original>
// kernel: tpu_custom_call.1
$region0: #{tpu_custom_call.1}
  #allocation0 [shape = 'u32[]', space=smem, size = 0x4, offset = 0x4, fixed_abs, tag = 'smem constant byte address 0x4 - core index']
  #allocation1 [shape = 'u32[72,128]{1,0:T(1,128)}', space=vmem, size = 0x9000, scoped, tag = 'internal scratch']
  %s0 = inlined_call_operand.hbm [shape: f32[32,512], index: 0, kind: input, shape index: {}]
  %s1 = inlined_call_operand.vmem [shape: f32[10,64,64], index: 1, kind: input, shape index: {}]
  %s2 = inlined_call_operand.vmem [shape: f32[10,64,1], index: 2, kind: input, shape index: {}]
  %s3 = inlined_call_operand.hbm [shape: f32[32,512], index: 3, kind: output, shape index: {}]
  %s4 = sld [smem:[#allocation0]]
  $region49: #{tpu_custom_call.1} parent=0
    _
  %s6 = ssub.s32 1, %s4
  %s7 = scalar_select 0, %s6, %s4
  $region1: #{tpu_custom_call.1} parent=0
    #allocation2 [shape = 'u8[65536]{0}', space=vmem, size = 0x10000, scoped, tag = 'input window, operand 0']
    #allocation3 [shape = 's32[2]{0}', space=sflag, size = 0x8, scoped, tag = 'scoped memory for tpu_custom_call.1']
    #allocation4 [shape = 's32[2]{0}', space=sflag, size = 0x8, scoped, tag = 'scoped memory for tpu_custom_call.1']
    #allocation5 [shape = 'u8[65536]{0}', space=vmem, size = 0x10000, scoped, tag = 'output window, operand 0']
    %8 = vsyncpa [#allocation3], 0
    %s9 = scalar_lea.sflag [#allocation3], 1
    %10 = vsyncpa %s9, 0
    %11 = vsyncpa [#allocation4], 0
    %s12 = scalar_lea.sflag [#allocation4], 1
    %13 = vsyncpa %s12, 0
    loop: start=0, step=1, limit=4
    $region2: #{tpu_custom_call.1} parent=1 // loop_pre_header
      _
    $region3: #{tpu_custom_call.1} parent=1 // loop_header
      %s15 = sphi 0, %s19
      %p16 = scmp.ge.s32.totalorder %s15, 4
      %s25 = sphi 0, %s27
      %s28 = sphi 0, %s25
      %s29 = sphi 0, %s28
      %s45 = sphi 0, %s29
      %s49 = sphi 0, %s49
      %s51 = sphi 0, %s49
      %s52 = sphi 0, %s51
      %s66 = sphi 0, %s52
      %s70 = sphi 0, %s70
      %s72 = sphi 0, %s70
      %s73 = sphi 0, %s72
      %s87 = sphi 0, %s73
      %s93 = sphi 0, %s95
      %s96 = sphi 0, %s93
      %s97 = sphi 0, %s96
      %s113 = sphi 0, %s97
    $region4: #{tpu_custom_call.1} parent=1 // loop_header_branch
      %18 = sbr.rel (%p16) target = $region8
    $region5: #{tpu_custom_call.1} parent=1 // loop_body
      %s20 = ssub.s32 %s15, 1
      %s21 = ssub.s32 %s15, 2
      %s22 = sadd.s32 %s15, 1
      %s23 = ssub.s32 %s15, %s22
      %p24 = scmp.eq.s32.totalorder %s23, 0
      %s26 = sadd.s32 %s25, 1
      %s27 = scalar_select %p24, %s25, %s26
      %p30 = pneg %p24
      %p31 = scmp.eq.s32.totalorder %s15, 1
      %p32 = por %p30, %p31
      %p33 = scmp.ne.s32.totalorder %s25, %s28
      %p34 = scmp.eq.s32.totalorder %s15, 0
      %p35 = por %p33, %p34
      %p36 = scmp.ne.s32.totalorder %s25, %s28
      %p37 = scmp.eq.s32.totalorder %s20, 1
      %p38 = por %p36, %p37
      %p39 = scmp.ne.s32.totalorder %s28, %s29
      %p40 = scmp.eq.s32.totalorder %s20, 0
      %p41 = por %p39, %p40
      %p42 = scmp.ne.s32.totalorder %s28, %s29
      %p43 = scmp.eq.s32.totalorder %s21, 1
      %p44 = por %p42, %p43
      %p46 = scmp.ne.s32.totalorder %s29, %s45
      %p47 = scmp.eq.s32.totalorder %s21, 0
      %p48 = por %p46, %p47
      %s50 = sadd.s32 %s49, 1
      %p53 = scmp.eq.s32.totalorder %s15, 1
      %p54 = scmp.ne.s32.totalorder %s49, %s51
      %p55 = scmp.eq.s32.totalorder %s15, 0
      %p56 = por %p54, %p55
      %p57 = scmp.ne.s32.totalorder %s49, %s51
      %p58 = scmp.eq.s32.totalorder %s20, 1
      %p59 = por %p57, %p58
      %p60 = scmp.ne.s32.totalorder %s51, %s52
      %p61 = scmp.eq.s32.totalorder %s20, 0
      %p62 = por %p60, %p61
      %p63 = scmp.ne.s32.totalorder %s51, %s52
      %p64 = scmp.eq.s32.totalorder %s21, 1
      %p65 = por %p63, %p64
      %p67 = scmp.ne.s32.totalorder %s52, %s66
      %p68 = scmp.eq.s32.totalorder %s21, 0
      %p69 = por %p67, %p68
      %s71 = sadd.s32 %s70, 1
      %p74 = scmp.eq.s32.totalorder %s15, 1
      %p75 = scmp.ne.s32.totalorder %s70, %s72
      %p76 = scmp.eq.s32.totalorder %s15, 0
      %p77 = por %p75, %p76
      %p78 = scmp.ne.s32.totalorder %s70, %s72
      %p79 = scmp.eq.s32.totalorder %s20, 1
      %p80 = por %p78, %p79
      %p81 = scmp.ne.s32.totalorder %s72, %s73
      %p82 = scmp.eq.s32.totalorder %s20, 0
      %p83 = por %p81, %p82
      %p84 = scmp.ne.s32.totalorder %s72, %s73
      %p85 = scmp.eq.s32.totalorder %s21, 1
      %p86 = por %p84, %p85
      %p88 = scmp.ne.s32.totalorder %s73, %s87
      %p89 = scmp.eq.s32.totalorder %s21, 0
      %p90 = por %p88, %p89
      %s91 = ssub.s32 %s15, %s22
      %p92 = scmp.eq.s32.totalorder %s91, 0
      %s94 = sadd.s32 %s93, 1
      %s95 = scalar_select %p92, %s93, %s94
      %p98 = pneg %p92
      %p99 = scmp.eq.s32.totalorder %s15, 1
      %p100 = por %p98, %p99
      %p101 = scmp.ne.s32.totalorder %s93, %s96
      %p102 = scmp.eq.s32.totalorder %s15, 0
      %p103 = por %p101, %p102
      %p104 = scmp.ne.s32.totalorder %s93, %s96
      %p105 = scmp.eq.s32.totalorder %s20, 1
      %p106 = por %p104, %p105
      %p107 = scmp.ne.s32.totalorder %s96, %s97
      %p108 = scmp.eq.s32.totalorder %s20, 0
      %p109 = por %p107, %p108
      %p110 = scmp.ne.s32.totalorder %s96, %s97
      %p111 = scmp.eq.s32.totalorder %s21, 1
      %p112 = por %p110, %p111
      %p114 = scmp.ne.s32.totalorder %s97, %s113
      %p115 = scmp.eq.s32.totalorder %s21, 0
      %p116 = por %p114, %p115
      %p117 = scmp.le.s32.totalorder 1, %s15
      %p118 = scmp.lt.s32.totalorder %s15, 3
      %p119 = pnand %p117, %p118
      %p120 = pneg %p119
      // Predicated region
      $region9: #{tpu_custom_call.1} parent=5 // pred_check
        _
      $region10: #{tpu_custom_call.1} parent=5 // pred_check_branch
        %122 = sbr.rel (%p119) target = $region12
      $region11: #{tpu_custom_call.1} parent=5 // pred_region
        %s123 = ssub.s32 %s15, 1
        // Predicated region
        $region13: #{tpu_custom_call.1} parent=11 // pred_check
          %p124 = pneg %p62
        $region14: #{tpu_custom_call.1} parent=11 // pred_check_branch
          %126 = sbr.rel (%p124) target = $region16
        $region15: #{tpu_custom_call.1} parent=11 // pred_region
          _
        $region16: #{tpu_custom_call.1} parent=11 // pred_fallthru
          _
        // Predicated region
        $region17: #{tpu_custom_call.1} parent=11 // pred_check
          %p127 = pneg %p83
        $region18: #{tpu_custom_call.1} parent=11 // pred_check_branch
          %129 = sbr.rel (%p127) target = $region20
        $region19: #{tpu_custom_call.1} parent=11 // pred_region
          _
        $region20: #{tpu_custom_call.1} parent=11 // pred_fallthru
          _
      $region12: #{tpu_custom_call.1} parent=5 // pred_fallthru
        _
      %p130 = scmp.lt.s32.totalorder %s15, 2
      // Predicated region
      $region21: #{tpu_custom_call.1} parent=5 // pred_check
        %p131 = pneg %p130
      $region22: #{tpu_custom_call.1} parent=5 // pred_check_branch
        %133 = sbr.rel (%p131) target = $region24
      $region23: #{tpu_custom_call.1} parent=5 // pred_region
        // Predicated region
        $region25: #{tpu_custom_call.1} parent=23 // pred_check
          %p134 = pneg %p35
        $region26: #{tpu_custom_call.1} parent=23 // pred_check_branch
          %136 = sbr.rel (%p134) target = $region28
        $region27: #{tpu_custom_call.1} parent=23 // pred_region
          %s137 = sand.u32 %s25, 1
          %s138 = scalar_lea.sflag [#allocation3], %s137
          %s139 = sand.u32 %s25, 1
          %s140 = smul.addr %s139, 64
          %s141 = scalar_lea.vmem [#allocation2], %s140
          %s142 = smul.u32 2, %s15
          %144 = vsyncadd %s138, 0
          %s145 = smul.addr %s142, 8
          %s146 = scalar_lea.hbm %s0, %s145
          %s147 = sshll.u32 %s146, 4
          %s148 = int_to_ptr.hbm [resolvable:$true] %s147
          %s149 = sshll.u32 %s141, 4
          %s150 = int_to_ptr.vmem [resolvable:$true] %s149
          %155 = dma.hbm_to_vmem [thread:$0]  %s148, 1024, %s150, %s138, 512, 256, 16
        $region28: #{tpu_custom_call.1} parent=23 // pred_fallthru
          _
      $region24: #{tpu_custom_call.1} parent=5 // pred_fallthru
        _
      %p156 = scmp.le.s32.totalorder 1, %s15
      %p157 = scmp.lt.s32.totalorder %s15, 3
      %p158 = pnand %p156, %p157
      %p159 = pneg %p158
      // Predicated region
      $region29: #{tpu_custom_call.1} parent=5 // pred_check
        _
      $region30: #{tpu_custom_call.1} parent=5 // pred_check_branch
        %161 = sbr.rel (%p158) target = $region32
      $region31: #{tpu_custom_call.1} parent=5 // pred_region
        %s162 = ssub.s32 %s15, 1
        %s163 = sand.u32 %s28, 1
        %s164 = scalar_lea.sflag [#allocation3], %s163
        %s165 = sand.u32 %s28, 1
        %s166 = smul.addr %s165, 64
        %s167 = scalar_lea.vmem [#allocation2], %s166
        // Predicated region
        $region33: #{tpu_custom_call.1} parent=31 // pred_check
          %p168 = pneg %p41
        $region34: #{tpu_custom_call.1} parent=31 // pred_check_branch
          %170 = sbr.rel (%p168) target = $region36
        $region35: #{tpu_custom_call.1} parent=31 // pred_region
          %172 = dma.done %s164, 1024
        $region36: #{tpu_custom_call.1} parent=31 // pred_fallthru
          _
        %s173 = sand.u32 %s28, 1
        %s174 = scalar_lea.sflag [#allocation3], %s173
        %s175 = sand.u32 %s28, 1
        %s176 = smul.addr %s175, 64
        %s177 = scalar_lea.vmem [#allocation2], %s176
        %p178 = pneg %p41
        %p179 = pneg %p38
        %p180 = pneg %p62
        %p181 = pneg %p59
        %p182 = pneg %p83
        %p183 = pneg %p80
        %p184 = pneg %p109
        %p185 = pneg %p106
        %s186 = sand.u32 %s96, 1
        %s187 = scalar_lea.sflag [#allocation4], %s186
        %s188 = sand.u32 %s96, 1
        %s189 = smul.addr %s188, 64
        %s190 = scalar_lea.vmem [#allocation5], %s189
        %s191 = smul.u32 2, %s20
        %s192 = smul.u32 2, %s20
        %v193 = vld [vmem:[%s167] sm:$0xff]
        %v194 = vld [vmem:[%s167 + $0x8] sm:$0xff]
        %v195 = vld [vmem:[%s167 + $0x10] sm:$0xff]
        %v196 = vld [vmem:[%s167 + $0x18] sm:$0xff]
        %v197 = vld [vmem:[%s167 + $0x20] sm:$0xff]
        %v198 = vld [vmem:[%s167 + $0x28] sm:$0xff]
        %v199 = vld [vmem:[%s167 + $0x30] sm:$0xff]
        %v200 = vld [vmem:[%s167 + $0x38] sm:$0xff]
        %v201 = vld [vmem:[%s1] sm:$0xff]
        %v202 = vld [vmem:[%s1 + $0x8] sm:$0xff]
        %v203 = vld [vmem:[%s1 + $0x10] sm:$0xff]
        %v204 = vld [vmem:[%s1 + $0x18] sm:$0xff]
        %v205 = vld [vmem:[%s1 + $0x20] sm:$0xff]
        %v206 = vld [vmem:[%s1 + $0x28] sm:$0xff]
        %v207 = vld [vmem:[%s1 + $0x30] sm:$0xff]
        %v208 = vld [vmem:[%s1 + $0x38] sm:$0xff]
        %v209 = vld [vmem:[%s2] sm:$0xff]
        %v210 = vld [vmem:[%s2 + $0x8] sm:$0xff]
        %v211 = vld [vmem:[%s2 + $0x10] sm:$0xff]
        %v212 = vld [vmem:[%s2 + $0x18] sm:$0xff]
        %v213 = vld [vmem:[%s2 + $0x20] sm:$0xff]
        %v214 = vld [vmem:[%s2 + $0x28] sm:$0xff]
        %v215 = vld [vmem:[%s2 + $0x30] sm:$0xff]
        %v216 = vld [vmem:[%s2 + $0x38] sm:$0xff]
        %218 = vset.pattern.permute.xlu0 0
        %219 = vperm.xlu0 %218, %v209
        %v220 = vpop.permute.xlu0 %219
        %223 = vset.pattern.permute.xlu0 0
        %224 = vperm.xlu0 %223, %v210
        %v225 = vpop.permute.xlu0 %224
        %228 = vset.pattern.permute.xlu0 0
        %229 = vperm.xlu0 %228, %v211
        %v230 = vpop.permute.xlu0 %229
        %233 = vset.pattern.permute.xlu0 0
        %234 = vperm.xlu0 %233, %v212
        %v235 = vpop.permute.xlu0 %234
        %238 = vset.pattern.permute.xlu0 0
        %239 = vperm.xlu0 %238, %v213
        %v240 = vpop.permute.xlu0 %239
        %243 = vset.pattern.permute.xlu0 0
        %244 = vperm.xlu0 %243, %v214
        %v245 = vpop.permute.xlu0 %244
        %248 = vset.pattern.permute.xlu0 0
        %249 = vperm.xlu0 %248, %v215
        %v250 = vpop.permute.xlu0 %249
        %253 = vset.pattern.permute.xlu0 0
        %254 = vperm.xlu0 %253, %v216
        %v255 = vpop.permute.xlu0 %254
        %vm257 = vcmask 261120
        %v259 = vsel %vm257, %v201, 0
        %v262 = vsel %vm257, %v202, 0
        %v265 = vsel %vm257, %v203, 0
        %v268 = vsel %vm257, %v204, 0
        %v271 = vsel %vm257, %v205, 0
        %v274 = vsel %vm257, %v206, 0
        %v277 = vsel %vm257, %v207, 0
        %v280 = vsel %vm257, %v208, 0
        %282 = vmatpush.msra.mxu0 0.0
        %283 = vmatpush.msra.mxu0 0.0
        %284 = vmatpush.msra.mxu0 0.0
        %285 = vmatpush.msra.mxu0 0.0
        %286 = vmatpush.msra.mxu0 0.0
        %287 = vmatpush.msra.mxu0 0.0
        %288 = vmatpush.msra.mxu0 0.0
        %289 = vmatpush.msra.mxu0 0.0
        %290 = vmatpush.msra.mxu0 0.0
        %291 = vmatpush.msra.mxu0 0.0
        %292 = vmatpush.msra.mxu0 0.0
        %293 = vmatpush.msra.mxu0 0.0
        %294 = vmatpush.msra.mxu0 %v199
        %295 = vmatpush.msra.mxu0 %v197
        %296 = vmatpush.msra.mxu0 %v195
        %297 = vmatpush.msra.mxu0 %v193
        %298 = vmatmul.f32.gmra.mxu0 %v259
        %v299 = vpop.f32.mrf.mxu0
        %v300 = vadd.f32 %v220, %v299
        %301 = vmatmul.f32.gmra.mxu0 %v262
        %v302 = vpop.f32.mrf.mxu0
        %v303 = vadd.f32 %v225, %v302
        %304 = vmatmul.f32.gmra.mxu0 %v265
        %v305 = vpop.f32.mrf.mxu0
        %v306 = vadd.f32 %v230, %v305
        %307 = vmatmul.f32.gmra.mxu0 %v268
        %v308 = vpop.f32.mrf.mxu0
        %v309 = vadd.f32 %v235, %v308
        %310 = vmatmul.f32.gmra.mxu0 %v271
        %v311 = vpop.f32.mrf.mxu0
        %v312 = vadd.f32 %v240, %v311
        %313 = vmatmul.f32.gmra.mxu0 %v274
        %v314 = vpop.f32.mrf.mxu0
        %v315 = vadd.f32 %v245, %v314
        %316 = vmatmul.f32.gmra.mxu0 %v277
        %v317 = vpop.f32.mrf.mxu0
        %v318 = vadd.f32 %v250, %v317
        %319 = vmatmul.f32.gmra.mxu0 %v280
        %v320 = vpop.f32.mrf.mxu0
        %v321 = vadd.f32 %v255, %v320
        %322 = vdwg.mxu0
        %323 = vmatpush.msra.mxu0 0.0
        %324 = vmatpush.msra.mxu0 0.0
        %325 = vmatpush.msra.mxu0 0.0
        %326 = vmatpush.msra.mxu0 0.0
        %327 = vmatpush.msra.mxu0 0.0
        %328 = vmatpush.msra.mxu0 0.0
        %329 = vmatpush.msra.mxu0 0.0
        %330 = vmatpush.msra.mxu0 0.0
        %331 = vmatpush.msra.mxu0 0.0
        %332 = vmatpush.msra.mxu0 0.0
        %333 = vmatpush.msra.mxu0 0.0
        %334 = vmatpush.msra.mxu0 0.0
        %335 = vmatpush.msra.mxu0 %v200
        %336 = vmatpush.msra.mxu0 %v198
        %337 = vmatpush.msra.mxu0 %v196
        %338 = vmatpush.msra.mxu0 %v194
        %339 = vmatmul.f32.gmra.mxu0 %v259
        %v340 = vpop.f32.mrf.mxu0
        %v341 = vadd.f32 %v220, %v340
        %342 = vmatmul.f32.gmra.mxu0 %v262
        %v343 = vpop.f32.mrf.mxu0
        %v344 = vadd.f32 %v225, %v343
        %345 = vmatmul.f32.gmra.mxu0 %v265
        %v346 = vpop.f32.mrf.mxu0
        %v347 = vadd.f32 %v230, %v346
        %348 = vmatmul.f32.gmra.mxu0 %v268
        %v349 = vpop.f32.mrf.mxu0
        %v350 = vadd.f32 %v235, %v349
        %351 = vmatmul.f32.gmra.mxu0 %v271
        %v352 = vpop.f32.mrf.mxu0
        %v353 = vadd.f32 %v240, %v352
        %354 = vmatmul.f32.gmra.mxu0 %v274
        %v355 = vpop.f32.mrf.mxu0
        %v356 = vadd.f32 %v245, %v355
        %357 = vmatmul.f32.gmra.mxu0 %v277
        %v358 = vpop.f32.mrf.mxu0
        %v359 = vadd.f32 %v250, %v358
        %360 = vmatmul.f32.gmra.mxu0 %v280
        %v361 = vpop.f32.mrf.mxu0
        %v362 = vadd.f32 %v255, %v361
        %363 = vdwg.mxu0
        %vm364 = vcmp.gt.f32.partialorder %v300, 0.0
        %vm365 = vcmp.gt.f32.partialorder %v341, 0.0
        %vm366 = vcmp.gt.f32.partialorder %v303, 0.0
        %vm367 = vcmp.gt.f32.partialorder %v344, 0.0
        %vm368 = vcmp.gt.f32.partialorder %v306, 0.0
        %vm369 = vcmp.gt.f32.partialorder %v347, 0.0
        %vm370 = vcmp.gt.f32.partialorder %v309, 0.0
        %vm371 = vcmp.gt.f32.partialorder %v350, 0.0
        %vm372 = vcmp.gt.f32.partialorder %v312, 0.0
        %vm373 = vcmp.gt.f32.partialorder %v353, 0.0
        %vm374 = vcmp.gt.f32.partialorder %v315, 0.0
        %vm375 = vcmp.gt.f32.partialorder %v356, 0.0
        %vm376 = vcmp.gt.f32.partialorder %v318, 0.0
        %vm377 = vcmp.gt.f32.partialorder %v359, 0.0
        %vm378 = vcmp.gt.f32.partialorder %v321, 0.0
        %vm379 = vcmp.gt.f32.partialorder %v362, 0.0
        %v380 = vmul.f32 %v300, 0.01
        %v381 = vmul.f32 %v341, 0.01
        %v382 = vmul.f32 %v303, 0.01
        %v383 = vmul.f32 %v344, 0.01
        %v384 = vmul.f32 %v306, 0.01
        %v385 = vmul.f32 %v347, 0.01
        %v386 = vmul.f32 %v309, 0.01
        %v387 = vmul.f32 %v350, 0.01
        %v388 = vmul.f32 %v312, 0.01
        %v389 = vmul.f32 %v353, 0.01
        %v390 = vmul.f32 %v315, 0.01
        %v391 = vmul.f32 %v356, 0.01
        %v392 = vmul.f32 %v318, 0.01
        %v393 = vmul.f32 %v359, 0.01
        %v394 = vmul.f32 %v321, 0.01
        %v395 = vmul.f32 %v362, 0.01
        %v396 = vsel %vm364, %v300, %v380
        %v397 = vsel %vm365, %v341, %v381
        %v398 = vsel %vm366, %v303, %v382
        %v399 = vsel %vm367, %v344, %v383
        %v400 = vsel %vm368, %v306, %v384
        %v401 = vsel %vm369, %v347, %v385
        %v402 = vsel %vm370, %v309, %v386
        %v403 = vsel %vm371, %v350, %v387
        %v404 = vsel %vm372, %v312, %v388
        %v405 = vsel %vm373, %v353, %v389
        %v406 = vsel %vm374, %v315, %v390
        %v407 = vsel %vm375, %v356, %v391
        %v408 = vsel %vm376, %v318, %v392
        %v409 = vsel %vm377, %v359, %v393
        %v410 = vsel %vm378, %v321, %v394
        %v411 = vsel %vm379, %v362, %v395
        %s412 = scalar_lea.vmem %s1, 64
        %v413 = vld [vmem:[%s412] sm:$0xff]
        %v414 = vld [vmem:[%s412 + $0x8] sm:$0xff]
        %v415 = vld [vmem:[%s412 + $0x10] sm:$0xff]
        %v416 = vld [vmem:[%s412 + $0x18] sm:$0xff]
        %s417 = scalar_lea.vmem %s2, 64
        %v418 = vld [vmem:[%s417] sm:$0xff]
        %v419 = vld [vmem:[%s417 + $0x8] sm:$0xff]
        %v420 = vld [vmem:[%s417 + $0x10] sm:$0xff]
        %v421 = vld [vmem:[%s417 + $0x18] sm:$0xff]
        %423 = vset.pattern.permute.xlu0 0
        %424 = vperm.xlu0 %423, %v418
        %v425 = vpop.permute.xlu0 %424
        %428 = vset.pattern.permute.xlu0 0
        %429 = vperm.xlu0 %428, %v419
        %v430 = vpop.permute.xlu0 %429
        %433 = vset.pattern.permute.xlu0 0
        %434 = vperm.xlu0 %433, %v420
        %v435 = vpop.permute.xlu0 %434
        %438 = vset.pattern.permute.xlu0 0
        %439 = vperm.xlu0 %438, %v421
        %v440 = vpop.permute.xlu0 %439
        %vm442 = vcmask 523264
        %v444 = vsel %vm442, %v413, 0
        %v447 = vsel %vm442, %v414, 0
        %v450 = vsel %vm442, %v415, 0
        %v453 = vsel %vm442, %v416, 0
        %455 = vmatpush.msra.mxu0 0.0
        %456 = vmatpush.msra.mxu0 0.0
        %457 = vmatpush.msra.mxu0 0.0
        %458 = vmatpush.msra.mxu0 0.0
        %459 = vmatpush.msra.mxu0 0.0
        %460 = vmatpush.msra.mxu0 0.0
        %461 = vmatpush.msra.mxu0 0.0
        %462 = vmatpush.msra.mxu0 0.0
        %463 = vmatpush.msra.mxu0 %v410
        %464 = vmatpush.msra.mxu0 %v408
        %465 = vmatpush.msra.mxu0 %v406
        %466 = vmatpush.msra.mxu0 %v404
        %467 = vmatpush.msra.mxu0 %v402
        %468 = vmatpush.msra.mxu0 %v400
        %469 = vmatpush.msra.mxu0 %v398
        %470 = vmatpush.msra.mxu0 %v396
        %471 = vmatmul.f32.gmra.mxu0 %v444
        %v472 = vpop.f32.mrf.mxu0
        %v473 = vadd.f32 %v425, %v472
        %474 = vmatmul.f32.gmra.mxu0 %v447
        %v475 = vpop.f32.mrf.mxu0
        %v476 = vadd.f32 %v430, %v475
        %477 = vmatmul.f32.gmra.mxu0 %v450
        %v478 = vpop.f32.mrf.mxu0
        %v479 = vadd.f32 %v435, %v478
        %480 = vmatmul.f32.gmra.mxu0 %v453
        %v481 = vpop.f32.mrf.mxu0
        %v482 = vadd.f32 %v440, %v481
        %483 = vdwg.mxu0
        %484 = vmatpush.msra.mxu0 0.0
        %485 = vmatpush.msra.mxu0 0.0
        %486 = vmatpush.msra.mxu0 0.0
        %487 = vmatpush.msra.mxu0 0.0
        %488 = vmatpush.msra.mxu0 0.0
        %489 = vmatpush.msra.mxu0 0.0
        %490 = vmatpush.msra.mxu0 0.0
        %491 = vmatpush.msra.mxu0 0.0
        %492 = vmatpush.msra.mxu0 %v411
        %493 = vmatpush.msra.mxu0 %v409
        %494 = vmatpush.msra.mxu0 %v407
        %495 = vmatpush.msra.mxu0 %v405
        %496 = vmatpush.msra.mxu0 %v403
        %497 = vmatpush.msra.mxu0 %v401
        %498 = vmatpush.msra.mxu0 %v399
        %499 = vmatpush.msra.mxu0 %v397
        %500 = vmatmul.f32.gmra.mxu0 %v444
        %v501 = vpop.f32.mrf.mxu0
        %v502 = vadd.f32 %v425, %v501
        %503 = vmatmul.f32.gmra.mxu0 %v447
        %v504 = vpop.f32.mrf.mxu0
        %v505 = vadd.f32 %v430, %v504
        %506 = vmatmul.f32.gmra.mxu0 %v450
        %v507 = vpop.f32.mrf.mxu0
        %v508 = vadd.f32 %v435, %v507
        %509 = vmatmul.f32.gmra.mxu0 %v453
        %v510 = vpop.f32.mrf.mxu0
        %v511 = vadd.f32 %v440, %v510
        %512 = vdwg.mxu0
        %vm513 = vcmp.gt.f32.partialorder %v473, 0.0
        %vm514 = vcmp.gt.f32.partialorder %v502, 0.0
        %vm515 = vcmp.gt.f32.partialorder %v476, 0.0
        %vm516 = vcmp.gt.f32.partialorder %v505, 0.0
        %vm517 = vcmp.gt.f32.partialorder %v479, 0.0
        %vm518 = vcmp.gt.f32.partialorder %v508, 0.0
        %vm519 = vcmp.gt.f32.partialorder %v482, 0.0
        %vm520 = vcmp.gt.f32.partialorder %v511, 0.0
        %v521 = vmul.f32 %v473, 0.01
        %v522 = vmul.f32 %v502, 0.01
        %v523 = vmul.f32 %v476, 0.01
        %v524 = vmul.f32 %v505, 0.01
        %v525 = vmul.f32 %v479, 0.01
        %v526 = vmul.f32 %v508, 0.01
        %v527 = vmul.f32 %v482, 0.01
        %v528 = vmul.f32 %v511, 0.01
        %v529 = vsel %vm513, %v473, %v521
        %v530 = vsel %vm514, %v502, %v522
        %v531 = vsel %vm515, %v476, %v523
        %v532 = vsel %vm516, %v505, %v524
        %v533 = vsel %vm517, %v479, %v525
        %v534 = vsel %vm518, %v508, %v526
        %v535 = vsel %vm519, %v482, %v527
        %v536 = vsel %vm520, %v511, %v528
        %s537 = scalar_lea.vmem %s1, 128
        %v538 = vld [vmem:[%s537] sm:$0xff]
        %v539 = vld [vmem:[%s537 + $0x8] sm:$0xff]
        %s540 = scalar_lea.vmem %s2, 128
        %v541 = vld [vmem:[%s540] sm:$0xff]
        %v542 = vld [vmem:[%s540 + $0x8] sm:$0xff]
        %544 = vset.pattern.permute.xlu0 0
        %545 = vperm.xlu0 %544, %v541
        %v546 = vpop.permute.xlu0 %545
        %549 = vset.pattern.permute.xlu0 0
        %550 = vperm.xlu0 %549, %v542
        %v551 = vpop.permute.xlu0 %550
        %v554 = vsel %vm257, %v538, 0
        %v557 = vsel %vm257, %v539, 0
        %559 = vmatpush.msra.mxu0 0.0
        %560 = vmatpush.msra.mxu0 0.0
        %561 = vmatpush.msra.mxu0 0.0
        %562 = vmatpush.msra.mxu0 0.0
        %563 = vmatpush.msra.mxu0 0.0
        %564 = vmatpush.msra.mxu0 0.0
        %565 = vmatpush.msra.mxu0 0.0
        %566 = vmatpush.msra.mxu0 0.0
        %567 = vmatpush.msra.mxu0 0.0
        %568 = vmatpush.msra.mxu0 0.0
        %569 = vmatpush.msra.mxu0 0.0
        %570 = vmatpush.msra.mxu0 0.0
        %571 = vmatpush.msra.mxu0 %v535
        %572 = vmatpush.msra.mxu0 %v533
        %573 = vmatpush.msra.mxu0 %v531
        %574 = vmatpush.msra.mxu0 %v529
        %575 = vmatmul.f32.gmra.mxu0 %v554
        %v576 = vpop.f32.mrf.mxu0
        %v577 = vadd.f32 %v546, %v576
        %578 = vmatmul.f32.gmra.mxu0 %v557
        %v579 = vpop.f32.mrf.mxu0
        %v580 = vadd.f32 %v551, %v579
        %581 = vdwg.mxu0
        %582 = vmatpush.msra.mxu0 0.0
        %583 = vmatpush.msra.mxu0 0.0
        %584 = vmatpush.msra.mxu0 0.0
        %585 = vmatpush.msra.mxu0 0.0
        %586 = vmatpush.msra.mxu0 0.0
        %587 = vmatpush.msra.mxu0 0.0
        %588 = vmatpush.msra.mxu0 0.0
        %589 = vmatpush.msra.mxu0 0.0
        %590 = vmatpush.msra.mxu0 0.0
        %591 = vmatpush.msra.mxu0 0.0
        %592 = vmatpush.msra.mxu0 0.0
        %593 = vmatpush.msra.mxu0 0.0
        %594 = vmatpush.msra.mxu0 %v536
        %595 = vmatpush.msra.mxu0 %v534
        %596 = vmatpush.msra.mxu0 %v532
        %597 = vmatpush.msra.mxu0 %v530
        %598 = vmatmul.f32.gmra.mxu0 %v554
        %v599 = vpop.f32.mrf.mxu0
        %v600 = vadd.f32 %v546, %v599
        %601 = vmatmul.f32.gmra.mxu0 %v557
        %v602 = vpop.f32.mrf.mxu0
        %v603 = vadd.f32 %v551, %v602
        %604 = vdwg.mxu0
        %vm605 = vcmp.gt.f32.partialorder %v577, 0.0
        %vm606 = vcmp.gt.f32.partialorder %v600, 0.0
        %vm607 = vcmp.gt.f32.partialorder %v580, 0.0
        %vm608 = vcmp.gt.f32.partialorder %v603, 0.0
        %v609 = vmul.f32 %v577, 0.01
        %v610 = vmul.f32 %v600, 0.01
        %v611 = vmul.f32 %v580, 0.01
        %v612 = vmul.f32 %v603, 0.01
        %v613 = vsel %vm605, %v577, %v609
        %v614 = vsel %vm606, %v600, %v610
        %v615 = vsel %vm607, %v580, %v611
        %v616 = vsel %vm608, %v603, %v612
        %s617 = scalar_lea.vmem %s1, 192
        %v618 = vld [vmem:[%s617] sm:$0xff]
        %s619 = scalar_lea.vmem %s2, 192
        %v620 = vld [vmem:[%s619] sm:$0xff]
        %622 = vset.pattern.permute.xlu0 0
        %623 = vperm.xlu0 %622, %v620
        %v624 = vpop.permute.xlu0 %623
        %vm626 = vcmask 130048
        %v628 = vsel %vm626, %v618, 0
        %630 = vmatpush.msra.mxu0 0.0
        %631 = vmatpush.msra.mxu0 0.0
        %632 = vmatpush.msra.mxu0 0.0
        %633 = vmatpush.msra.mxu0 0.0
        %634 = vmatpush.msra.mxu0 0.0
        %635 = vmatpush.msra.mxu0 0.0
        %636 = vmatpush.msra.mxu0 0.0
        %637 = vmatpush.msra.mxu0 0.0
        %638 = vmatpush.msra.mxu0 0.0
        %639 = vmatpush.msra.mxu0 0.0
        %640 = vmatpush.msra.mxu0 0.0
        %641 = vmatpush.msra.mxu0 0.0
        %642 = vmatpush.msra.mxu0 0.0
        %643 = vmatpush.msra.mxu0 0.0
        %644 = vmatpush.msra.mxu0 %v615
        %645 = vmatpush.msra.mxu0 %v613
        %646 = vmatmul.f32.gmra.mxu0 %v628
        %v647 = vpop.f32.mrf.mxu0
        %v648 = vadd.f32 %v624, %v647
        %649 = vdwg.mxu0
        %650 = vmatpush.msra.mxu0 0.0
        %651 = vmatpush.msra.mxu0 0.0
        %652 = vmatpush.msra.mxu0 0.0
        %653 = vmatpush.msra.mxu0 0.0
        %654 = vmatpush.msra.mxu0 0.0
        %655 = vmatpush.msra.mxu0 0.0
        %656 = vmatpush.msra.mxu0 0.0
        %657 = vmatpush.msra.mxu0 0.0
        %658 = vmatpush.msra.mxu0 0.0
        %659 = vmatpush.msra.mxu0 0.0
        %660 = vmatpush.msra.mxu0 0.0
        %661 = vmatpush.msra.mxu0 0.0
        %662 = vmatpush.msra.mxu0 0.0
        %663 = vmatpush.msra.mxu0 0.0
        %664 = vmatpush.msra.mxu0 %v616
        %665 = vmatpush.msra.mxu0 %v614
        %666 = vmatmul.f32.gmra.mxu0 %v628
        %v667 = vpop.f32.mrf.mxu0
        %v668 = vadd.f32 %v624, %v667
        %669 = vdwg.mxu0
        %vm670 = vcmp.gt.f32.partialorder %v648, 0.0
        %vm671 = vcmp.gt.f32.partialorder %v668, 0.0
        %v672 = vmul.f32 %v648, 0.01
        %v673 = vmul.f32 %v668, 0.01
        %v674 = vsel %vm670, %v648, %v672
        %v675 = vsel %vm671, %v668, %v673
        %s676 = scalar_lea.vmem %s1, 256
        %v677 = vld [vmem:[%s676] sm:$0xff]
        %s678 = scalar_lea.vmem %s2, 256
        %v679 = vld [vmem:[%s678] sm:$0xff]
        %681 = vset.pattern.permute.xlu0 0
        %682 = vperm.xlu0 %681, %v679
        %v683 = vpop.permute.xlu0 %682
        %vm685 = vcmask 64512
        %v687 = vsel %vm685, %v677, 0
        %689 = vmatpush.msra.mxu0 0.0
        %690 = vmatpush.msra.mxu0 0.0
        %691 = vmatpush.msra.mxu0 0.0
        %692 = vmatpush.msra.mxu0 0.0
        %693 = vmatpush.msra.mxu0 0.0
        %694 = vmatpush.msra.mxu0 0.0
        %695 = vmatpush.msra.mxu0 0.0
        %696 = vmatpush.msra.mxu0 0.0
        %697 = vmatpush.msra.mxu0 0.0
        %698 = vmatpush.msra.mxu0 0.0
        %699 = vmatpush.msra.mxu0 0.0
        %700 = vmatpush.msra.mxu0 0.0
        %701 = vmatpush.msra.mxu0 0.0
        %702 = vmatpush.msra.mxu0 0.0
        %703 = vmatpush.msra.mxu0 0.0
        %704 = vmatpush.msra.mxu0 %v674
        %705 = vmatmul.f32.gmra.mxu0 %v687
        %v706 = vpop.f32.mrf.mxu0
        %v707 = vadd.f32 %v683, %v706
        %708 = vdwg.mxu0
        %709 = vmatpush.msra.mxu0 0.0
        %710 = vmatpush.msra.mxu0 0.0
        %711 = vmatpush.msra.mxu0 0.0
        %712 = vmatpush.msra.mxu0 0.0
        %713 = vmatpush.msra.mxu0 0.0
        %714 = vmatpush.msra.mxu0 0.0
        %715 = vmatpush.msra.mxu0 0.0
        %716 = vmatpush.msra.mxu0 0.0
        %717 = vmatpush.msra.mxu0 0.0
        %718 = vmatpush.msra.mxu0 0.0
        %719 = vmatpush.msra.mxu0 0.0
        %720 = vmatpush.msra.mxu0 0.0
        %721 = vmatpush.msra.mxu0 0.0
        %722 = vmatpush.msra.mxu0 0.0
        %723 = vmatpush.msra.mxu0 0.0
        %724 = vmatpush.msra.mxu0 %v675
        %725 = vmatmul.f32.gmra.mxu0 %v687
        %v726 = vpop.f32.mrf.mxu0
        %v727 = vadd.f32 %v683, %v726
        %728 = vdwg.mxu0
        %s729 = scalar_lea.vmem %s1, 320
        %v730 = vld [vmem:[%s729] sm:$0xff]
        %s731 = scalar_lea.vmem %s2, 320
        %v732 = vld [vmem:[%s731] sm:$0xff]
        %734 = vset.pattern.permute.xlu0 0
        %735 = vperm.xlu0 %734, %v732
        %v736 = vpop.permute.xlu0 %735
        %v739 = vsel %vm685, %v730, 0
        %741 = vmatpush.msra.mxu0 0.0
        %742 = vmatpush.msra.mxu0 0.0
        %743 = vmatpush.msra.mxu0 0.0
        %744 = vmatpush.msra.mxu0 0.0
        %745 = vmatpush.msra.mxu0 0.0
        %746 = vmatpush.msra.mxu0 0.0
        %747 = vmatpush.msra.mxu0 0.0
        %748 = vmatpush.msra.mxu0 0.0
        %749 = vmatpush.msra.mxu0 0.0
        %750 = vmatpush.msra.mxu0 0.0
        %751 = vmatpush.msra.mxu0 0.0
        %752 = vmatpush.msra.mxu0 0.0
        %753 = vmatpush.msra.mxu0 0.0
        %754 = vmatpush.msra.mxu0 0.0
        %755 = vmatpush.msra.mxu0 0.0
        %756 = vmatpush.msra.mxu0 %v707
        %757 = vmatmul.f32.gmra.mxu0 %v739
        %v758 = vpop.f32.mrf.mxu0
        %v759 = vadd.f32 %v736, %v758
        %760 = vdwg.mxu0
        %761 = vmatpush.msra.mxu0 0.0
        %762 = vmatpush.msra.mxu0 0.0
        %763 = vmatpush.msra.mxu0 0.0
        %764 = vmatpush.msra.mxu0 0.0
        %765 = vmatpush.msra.mxu0 0.0
        %766 = vmatpush.msra.mxu0 0.0
        %767 = vmatpush.msra.mxu0 0.0
        %768 = vmatpush.msra.mxu0 0.0
        %769 = vmatpush.msra.mxu0 0.0
        %770 = vmatpush.msra.mxu0 0.0
        %771 = vmatpush.msra.mxu0 0.0
        %772 = vmatpush.msra.mxu0 0.0
        %773 = vmatpush.msra.mxu0 0.0
        %774 = vmatpush.msra.mxu0 0.0
        %775 = vmatpush.msra.mxu0 0.0
        %776 = vmatpush.msra.mxu0 %v727
        %777 = vmatmul.f32.gmra.mxu0 %v739
        %v778 = vpop.f32.mrf.mxu0
        %v779 = vadd.f32 %v736, %v778
        %780 = vdwg.mxu0
        %vm781 = vcmp.gt.f32.partialorder %v759, 0.0
        %vm782 = vcmp.gt.f32.partialorder %v779, 0.0
        %v783 = vmul.f32 %v759, 0.01
        %v784 = vmul.f32 %v779, 0.01
        %v785 = vsel %vm781, %v759, %v783
        %v786 = vsel %vm782, %v779, %v784
        %s787 = scalar_lea.vmem %s1, 384
        %v788 = vld [vmem:[%s787] sm:$0xff]
        %v789 = vld [vmem:[%s787 + $0x8] sm:$0xff]
        %s790 = scalar_lea.vmem %s2, 384
        %v791 = vld [vmem:[%s790] sm:$0xff]
        %v792 = vld [vmem:[%s790 + $0x8] sm:$0xff]
        %794 = vset.pattern.permute.xlu0 0
        %795 = vperm.xlu0 %794, %v791
        %v796 = vpop.permute.xlu0 %795
        %799 = vset.pattern.permute.xlu0 0
        %800 = vperm.xlu0 %799, %v792
        %v801 = vpop.permute.xlu0 %800
        %v804 = vsel %vm685, %v788, 0
        %v807 = vsel %vm685, %v789, 0
        %809 = vmatpush.msra.mxu0 0.0
        %810 = vmatpush.msra.mxu0 0.0
        %811 = vmatpush.msra.mxu0 0.0
        %812 = vmatpush.msra.mxu0 0.0
        %813 = vmatpush.msra.mxu0 0.0
        %814 = vmatpush.msra.mxu0 0.0
        %815 = vmatpush.msra.mxu0 0.0
        %816 = vmatpush.msra.mxu0 0.0
        %817 = vmatpush.msra.mxu0 0.0
        %818 = vmatpush.msra.mxu0 0.0
        %819 = vmatpush.msra.mxu0 0.0
        %820 = vmatpush.msra.mxu0 0.0
        %821 = vmatpush.msra.mxu0 0.0
        %822 = vmatpush.msra.mxu0 0.0
        %823 = vmatpush.msra.mxu0 0.0
        %824 = vmatpush.msra.mxu0 %v785
        %825 = vmatmul.f32.gmra.mxu0 %v804
        %v826 = vpop.f32.mrf.mxu0
        %v827 = vadd.f32 %v796, %v826
        %828 = vmatmul.f32.gmra.mxu0 %v807
        %v829 = vpop.f32.mrf.mxu0
        %v830 = vadd.f32 %v801, %v829
        %831 = vdwg.mxu0
        %832 = vmatpush.msra.mxu0 0.0
        %833 = vmatpush.msra.mxu0 0.0
        %834 = vmatpush.msra.mxu0 0.0
        %835 = vmatpush.msra.mxu0 0.0
        %836 = vmatpush.msra.mxu0 0.0
        %837 = vmatpush.msra.mxu0 0.0
        %838 = vmatpush.msra.mxu0 0.0
        %839 = vmatpush.msra.mxu0 0.0
        %840 = vmatpush.msra.mxu0 0.0
        %841 = vmatpush.msra.mxu0 0.0
        %842 = vmatpush.msra.mxu0 0.0
        %843 = vmatpush.msra.mxu0 0.0
        %844 = vmatpush.msra.mxu0 0.0
        %845 = vmatpush.msra.mxu0 0.0
        %846 = vmatpush.msra.mxu0 0.0
        %847 = vmatpush.msra.mxu0 %v786
        %848 = vmatmul.f32.gmra.mxu0 %v804
        %v849 = vpop.f32.mrf.mxu0
        %v850 = vadd.f32 %v796, %v849
        %851 = vmatmul.f32.gmra.mxu0 %v807
        %v852 = vpop.f32.mrf.mxu0
        %v853 = vadd.f32 %v801, %v852
        %854 = vdwg.mxu0
        %vm855 = vcmp.gt.f32.partialorder %v827, 0.0
        %vm856 = vcmp.gt.f32.partialorder %v850, 0.0
        %vm857 = vcmp.gt.f32.partialorder %v830, 0.0
        %vm858 = vcmp.gt.f32.partialorder %v853, 0.0
        %v859 = vmul.f32 %v827, 0.01
        %v860 = vmul.f32 %v850, 0.01
        %v861 = vmul.f32 %v830, 0.01
        %v862 = vmul.f32 %v853, 0.01
        %v863 = vsel %vm855, %v827, %v859
        %v864 = vsel %vm856, %v850, %v860
        %v865 = vsel %vm857, %v830, %v861
        %v866 = vsel %vm858, %v853, %v862
        %s867 = scalar_lea.vmem %s1, 448
        %v868 = vld [vmem:[%s867] sm:$0xff]
        %v869 = vld [vmem:[%s867 + $0x8] sm:$0xff]
        %v870 = vld [vmem:[%s867 + $0x10] sm:$0xff]
        %v871 = vld [vmem:[%s867 + $0x18] sm:$0xff]
        %s872 = scalar_lea.vmem %s2, 448
        %v873 = vld [vmem:[%s872] sm:$0xff]
        %v874 = vld [vmem:[%s872 + $0x8] sm:$0xff]
        %v875 = vld [vmem:[%s872 + $0x10] sm:$0xff]
        %v876 = vld [vmem:[%s872 + $0x18] sm:$0xff]
        %878 = vset.pattern.permute.xlu0 0
        %879 = vperm.xlu0 %878, %v873
        %v880 = vpop.permute.xlu0 %879
        %883 = vset.pattern.permute.xlu0 0
        %884 = vperm.xlu0 %883, %v874
        %v885 = vpop.permute.xlu0 %884
        %888 = vset.pattern.permute.xlu0 0
        %889 = vperm.xlu0 %888, %v875
        %v890 = vpop.permute.xlu0 %889
        %893 = vset.pattern.permute.xlu0 0
        %894 = vperm.xlu0 %893, %v876
        %v895 = vpop.permute.xlu0 %894
        %v898 = vsel %vm626, %v868, 0
        %v901 = vsel %vm626, %v869, 0
        %v904 = vsel %vm626, %v870, 0
        %v907 = vsel %vm626, %v871, 0
        %909 = vmatpush.msra.mxu0 0.0
        %910 = vmatpush.msra.mxu0 0.0
        %911 = vmatpush.msra.mxu0 0.0
        %912 = vmatpush.msra.mxu0 0.0
        %913 = vmatpush.msra.mxu0 0.0
        %914 = vmatpush.msra.mxu0 0.0
        %915 = vmatpush.msra.mxu0 0.0
        %916 = vmatpush.msra.mxu0 0.0
        %917 = vmatpush.msra.mxu0 0.0
        %918 = vmatpush.msra.mxu0 0.0
        %919 = vmatpush.msra.mxu0 0.0
        %920 = vmatpush.msra.mxu0 0.0
        %921 = vmatpush.msra.mxu0 0.0
        %922 = vmatpush.msra.mxu0 0.0
        %923 = vmatpush.msra.mxu0 %v865
        %924 = vmatpush.msra.mxu0 %v863
        %925 = vmatmul.f32.gmra.mxu0 %v898
        %v926 = vpop.f32.mrf.mxu0
        %v927 = vadd.f32 %v880, %v926
        %928 = vmatmul.f32.gmra.mxu0 %v901
        %v929 = vpop.f32.mrf.mxu0
        %v930 = vadd.f32 %v885, %v929
        %931 = vmatmul.f32.gmra.mxu0 %v904
        %v932 = vpop.f32.mrf.mxu0
        %v933 = vadd.f32 %v890, %v932
        %934 = vmatmul.f32.gmra.mxu0 %v907
        %v935 = vpop.f32.mrf.mxu0
        %v936 = vadd.f32 %v895, %v935
        %937 = vdwg.mxu0
        %938 = vmatpush.msra.mxu0 0.0
        %939 = vmatpush.msra.mxu0 0.0
        %940 = vmatpush.msra.mxu0 0.0
        %941 = vmatpush.msra.mxu0 0.0
        %942 = vmatpush.msra.mxu0 0.0
        %943 = vmatpush.msra.mxu0 0.0
        %944 = vmatpush.msra.mxu0 0.0
        %945 = vmatpush.msra.mxu0 0.0
        %946 = vmatpush.msra.mxu0 0.0
        %947 = vmatpush.msra.mxu0 0.0
        %948 = vmatpush.msra.mxu0 0.0
        %949 = vmatpush.msra.mxu0 0.0
        %950 = vmatpush.msra.mxu0 0.0
        %951 = vmatpush.msra.mxu0 0.0
        %952 = vmatpush.msra.mxu0 %v866
        %953 = vmatpush.msra.mxu0 %v864
        %954 = vmatmul.f32.gmra.mxu0 %v898
        %v955 = vpop.f32.mrf.mxu0
        %v956 = vadd.f32 %v880, %v955
        %957 = vmatmul.f32.gmra.mxu0 %v901
        %v958 = vpop.f32.mrf.mxu0
        %v959 = vadd.f32 %v885, %v958
        %960 = vmatmul.f32.gmra.mxu0 %v904
        %v961 = vpop.f32.mrf.mxu0
        %v962 = vadd.f32 %v890, %v961
        %963 = vmatmul.f32.gmra.mxu0 %v907
        %v964 = vpop.f32.mrf.mxu0
        %v965 = vadd.f32 %v895, %v964
        %966 = vdwg.mxu0
        %vm967 = vcmp.gt.f32.partialorder %v927, 0.0
        %vm968 = vcmp.gt.f32.partialorder %v956, 0.0
        %vm969 = vcmp.gt.f32.partialorder %v930, 0.0
        %vm970 = vcmp.gt.f32.partialorder %v959, 0.0
        %vm971 = vcmp.gt.f32.partialorder %v933, 0.0
        %vm972 = vcmp.gt.f32.partialorder %v962, 0.0
        %vm973 = vcmp.gt.f32.partialorder %v936, 0.0
        %vm974 = vcmp.gt.f32.partialorder %v965, 0.0
        %v975 = vmul.f32 %v927, 0.01
        %v976 = vmul.f32 %v956, 0.01
        %v977 = vmul.f32 %v930, 0.01
        %v978 = vmul.f32 %v959, 0.01
        %v979 = vmul.f32 %v933, 0.01
        %v980 = vmul.f32 %v962, 0.01
        %v981 = vmul.f32 %v936, 0.01
        %v982 = vmul.f32 %v965, 0.01
        %v983 = vsel %vm967, %v927, %v975
        %v984 = vsel %vm968, %v956, %v976
        %v985 = vsel %vm969, %v930, %v977
        %v986 = vsel %vm970, %v959, %v978
        %v987 = vsel %vm971, %v933, %v979
        %v988 = vsel %vm972, %v962, %v980
        %v989 = vsel %vm973, %v936, %v981
        %v990 = vsel %vm974, %v965, %v982
        %s991 = scalar_lea.vmem %s1, 512
        %v992 = vld [vmem:[%s991] sm:$0xff]
        %v993 = vld [vmem:[%s991 + $0x8] sm:$0xff]
        %v994 = vld [vmem:[%s991 + $0x10] sm:$0xff]
        %v995 = vld [vmem:[%s991 + $0x18] sm:$0xff]
        %v996 = vld [vmem:[%s991 + $0x20] sm:$0xff]
        %v997 = vld [vmem:[%s991 + $0x28] sm:$0xff]
        %v998 = vld [vmem:[%s991 + $0x30] sm:$0xff]
        %v999 = vld [vmem:[%s991 + $0x38] sm:$0xff]
        %s1000 = scalar_lea.vmem %s2, 512
        %v1001 = vld [vmem:[%s1000] sm:$0xff]
        %v1002 = vld [vmem:[%s1000 + $0x8] sm:$0xff]
        %v1003 = vld [vmem:[%s1000 + $0x10] sm:$0xff]
        %v1004 = vld [vmem:[%s1000 + $0x18] sm:$0xff]
        %v1005 = vld [vmem:[%s1000 + $0x20] sm:$0xff]
        %v1006 = vld [vmem:[%s1000 + $0x28] sm:$0xff]
        %v1007 = vld [vmem:[%s1000 + $0x30] sm:$0xff]
        %v1008 = vld [vmem:[%s1000 + $0x38] sm:$0xff]
        %1010 = vset.pattern.permute.xlu0 0
        %1011 = vperm.xlu0 %1010, %v1001
        %v1012 = vpop.permute.xlu0 %1011
        %1015 = vset.pattern.permute.xlu0 0
        %1016 = vperm.xlu0 %1015, %v1002
        %v1017 = vpop.permute.xlu0 %1016
        %1020 = vset.pattern.permute.xlu0 0
        %1021 = vperm.xlu0 %1020, %v1003
        %v1022 = vpop.permute.xlu0 %1021
        %1025 = vset.pattern.permute.xlu0 0
        %1026 = vperm.xlu0 %1025, %v1004
        %v1027 = vpop.permute.xlu0 %1026
        %1030 = vset.pattern.permute.xlu0 0
        %1031 = vperm.xlu0 %1030, %v1005
        %v1032 = vpop.permute.xlu0 %1031
        %1035 = vset.pattern.permute.xlu0 0
        %1036 = vperm.xlu0 %1035, %v1006
        %v1037 = vpop.permute.xlu0 %1036
        %1040 = vset.pattern.permute.xlu0 0
        %1041 = vperm.xlu0 %1040, %v1007
        %v1042 = vpop.permute.xlu0 %1041
        %1045 = vset.pattern.permute.xlu0 0
        %1046 = vperm.xlu0 %1045, %v1008
        %v1047 = vpop.permute.xlu0 %1046
        %v1050 = vsel %vm257, %v992, 0
        %v1053 = vsel %vm257, %v993, 0
        %v1056 = vsel %vm257, %v994, 0
        %v1059 = vsel %vm257, %v995, 0
        %v1062 = vsel %vm257, %v996, 0
        %v1065 = vsel %vm257, %v997, 0
        %v1068 = vsel %vm257, %v998, 0
        %v1071 = vsel %vm257, %v999, 0
        %1073 = vmatpush.msra.mxu0 0.0
        %1074 = vmatpush.msra.mxu0 0.0
        %1075 = vmatpush.msra.mxu0 0.0
        %1076 = vmatpush.msra.mxu0 0.0
        %1077 = vmatpush.msra.mxu0 0.0
        %1078 = vmatpush.msra.mxu0 0.0
        %1079 = vmatpush.msra.mxu0 0.0
        %1080 = vmatpush.msra.mxu0 0.0
        %1081 = vmatpush.msra.mxu0 0.0
        %1082 = vmatpush.msra.mxu0 0.0
        %1083 = vmatpush.msra.mxu0 0.0
        %1084 = vmatpush.msra.mxu0 0.0
        %1085 = vmatpush.msra.mxu0 %v989
        %1086 = vmatpush.msra.mxu0 %v987
        %1087 = vmatpush.msra.mxu0 %v985
        %1088 = vmatpush.msra.mxu0 %v983
        %1089 = vmatmul.f32.gmra.mxu0 %v1050
        %v1090 = vpop.f32.mrf.mxu0
        %v1091 = vadd.f32 %v1012, %v1090
        %1092 = vmatmul.f32.gmra.mxu0 %v1053
        %v1093 = vpop.f32.mrf.mxu0
        %v1094 = vadd.f32 %v1017, %v1093
        %1095 = vmatmul.f32.gmra.mxu0 %v1056
        %v1096 = vpop.f32.mrf.mxu0
        %v1097 = vadd.f32 %v1022, %v1096
        %1098 = vmatmul.f32.gmra.mxu0 %v1059
        %v1099 = vpop.f32.mrf.mxu0
        %v1100 = vadd.f32 %v1027, %v1099
        %1101 = vmatmul.f32.gmra.mxu0 %v1062
        %v1102 = vpop.f32.mrf.mxu0
        %v1103 = vadd.f32 %v1032, %v1102
        %1104 = vmatmul.f32.gmra.mxu0 %v1065
        %v1105 = vpop.f32.mrf.mxu0
        %v1106 = vadd.f32 %v1037, %v1105
        %1107 = vmatmul.f32.gmra.mxu0 %v1068
        %v1108 = vpop.f32.mrf.mxu0
        %v1109 = vadd.f32 %v1042, %v1108
        %1110 = vmatmul.f32.gmra.mxu0 %v1071
        %v1111 = vpop.f32.mrf.mxu0
        %v1112 = vadd.f32 %v1047, %v1111
        %1113 = vdwg.mxu0
        %1114 = vmatpush.msra.mxu0 0.0
        %1115 = vmatpush.msra.mxu0 0.0
        %1116 = vmatpush.msra.mxu0 0.0
        %1117 = vmatpush.msra.mxu0 0.0
        %1118 = vmatpush.msra.mxu0 0.0
        %1119 = vmatpush.msra.mxu0 0.0
        %1120 = vmatpush.msra.mxu0 0.0
        %1121 = vmatpush.msra.mxu0 0.0
        %1122 = vmatpush.msra.mxu0 0.0
        %1123 = vmatpush.msra.mxu0 0.0
        %1124 = vmatpush.msra.mxu0 0.0
        %1125 = vmatpush.msra.mxu0 0.0
        %1126 = vmatpush.msra.mxu0 %v990
        %1127 = vmatpush.msra.mxu0 %v988
        %1128 = vmatpush.msra.mxu0 %v986
        %1129 = vmatpush.msra.mxu0 %v984
        %1130 = vmatmul.f32.gmra.mxu0 %v1050
        %v1131 = vpop.f32.mrf.mxu0
        %v1132 = vadd.f32 %v1012, %v1131
        %1133 = vmatmul.f32.gmra.mxu0 %v1053
        %v1134 = vpop.f32.mrf.mxu0
        %v1135 = vadd.f32 %v1017, %v1134
        %1136 = vmatmul.f32.gmra.mxu0 %v1056
        %v1137 = vpop.f32.mrf.mxu0
        %v1138 = vadd.f32 %v1022, %v1137
        %1139 = vmatmul.f32.gmra.mxu0 %v1059
        %v1140 = vpop.f32.mrf.mxu0
        %v1141 = vadd.f32 %v1027, %v1140
        %1142 = vmatmul.f32.gmra.mxu0 %v1062
        %v1143 = vpop.f32.mrf.mxu0
        %v1144 = vadd.f32 %v1032, %v1143
        %1145 = vmatmul.f32.gmra.mxu0 %v1065
        %v1146 = vpop.f32.mrf.mxu0
        %v1147 = vadd.f32 %v1037, %v1146
        %1148 = vmatmul.f32.gmra.mxu0 %v1068
        %v1149 = vpop.f32.mrf.mxu0
        %v1150 = vadd.f32 %v1042, %v1149
        %1151 = vmatmul.f32.gmra.mxu0 %v1071
        %v1152 = vpop.f32.mrf.mxu0
        %v1153 = vadd.f32 %v1047, %v1152
        %1154 = vdwg.mxu0
        %vm1155 = vcmp.gt.f32.partialorder %v1091, 0.0
        %vm1156 = vcmp.gt.f32.partialorder %v1132, 0.0
        %vm1157 = vcmp.gt.f32.partialorder %v1094, 0.0
        %vm1158 = vcmp.gt.f32.partialorder %v1135, 0.0
        %vm1159 = vcmp.gt.f32.partialorder %v1097, 0.0
        %vm1160 = vcmp.gt.f32.partialorder %v1138, 0.0
        %vm1161 = vcmp.gt.f32.partialorder %v1100, 0.0
        %vm1162 = vcmp.gt.f32.partialorder %v1141, 0.0
        %vm1163 = vcmp.gt.f32.partialorder %v1103, 0.0
        %vm1164 = vcmp.gt.f32.partialorder %v1144, 0.0
        %vm1165 = vcmp.gt.f32.partialorder %v1106, 0.0
        %vm1166 = vcmp.gt.f32.partialorder %v1147, 0.0
        %vm1167 = vcmp.gt.f32.partialorder %v1109, 0.0
        %vm1168 = vcmp.gt.f32.partialorder %v1150, 0.0
        %vm1169 = vcmp.gt.f32.partialorder %v1112, 0.0
        %vm1170 = vcmp.gt.f32.partialorder %v1153, 0.0
        %v1171 = vmul.f32 %v1091, 0.01
        %v1172 = vmul.f32 %v1132, 0.01
        %v1173 = vmul.f32 %v1094, 0.01
        %v1174 = vmul.f32 %v1135, 0.01
        %v1175 = vmul.f32 %v1097, 0.01
        %v1176 = vmul.f32 %v1138, 0.01
        %v1177 = vmul.f32 %v1100, 0.01
        %v1178 = vmul.f32 %v1141, 0.01
        %v1179 = vmul.f32 %v1103, 0.01
        %v1180 = vmul.f32 %v1144, 0.01
        %v1181 = vmul.f32 %v1106, 0.01
        %v1182 = vmul.f32 %v1147, 0.01
        %v1183 = vmul.f32 %v1109, 0.01
        %v1184 = vmul.f32 %v1150, 0.01
        %v1185 = vmul.f32 %v1112, 0.01
        %v1186 = vmul.f32 %v1153, 0.01
        %v1187 = vsel %vm1155, %v1091, %v1171
        %v1188 = vsel %vm1156, %v1132, %v1172
        %v1189 = vsel %vm1157, %v1094, %v1173
        %v1190 = vsel %vm1158, %v1135, %v1174
        %v1191 = vsel %vm1159, %v1097, %v1175
        %v1192 = vsel %vm1160, %v1138, %v1176
        %v1193 = vsel %vm1161, %v1100, %v1177
        %v1194 = vsel %vm1162, %v1141, %v1178
        %v1195 = vsel %vm1163, %v1103, %v1179
        %v1196 = vsel %vm1164, %v1144, %v1180
        %v1197 = vsel %vm1165, %v1106, %v1181
        %v1198 = vsel %vm1166, %v1147, %v1182
        %v1199 = vsel %vm1167, %v1109, %v1183
        %v1200 = vsel %vm1168, %v1150, %v1184
        %v1201 = vsel %vm1169, %v1112, %v1185
        %v1202 = vsel %vm1170, %v1153, %v1186
        %s1203 = scalar_lea.vmem %s1, 576
        %v1204 = vld [vmem:[%s1203] sm:$0xff]
        %v1205 = vld [vmem:[%s1203 + $0x8] sm:$0xff]
        %v1206 = vld [vmem:[%s1203 + $0x10] sm:$0xff]
        %v1207 = vld [vmem:[%s1203 + $0x18] sm:$0xff]
        %s1208 = scalar_lea.vmem %s2, 576
        %v1209 = vld [vmem:[%s1208] sm:$0xff]
        %v1210 = vld [vmem:[%s1208 + $0x8] sm:$0xff]
        %v1211 = vld [vmem:[%s1208 + $0x10] sm:$0xff]
        %v1212 = vld [vmem:[%s1208 + $0x18] sm:$0xff]
        %1214 = vset.pattern.permute.xlu0 0
        %1215 = vperm.xlu0 %1214, %v1209
        %v1216 = vpop.permute.xlu0 %1215
        %1219 = vset.pattern.permute.xlu0 0
        %1220 = vperm.xlu0 %1219, %v1210
        %v1221 = vpop.permute.xlu0 %1220
        %1224 = vset.pattern.permute.xlu0 0
        %1225 = vperm.xlu0 %1224, %v1211
        %v1226 = vpop.permute.xlu0 %1225
        %1229 = vset.pattern.permute.xlu0 0
        %1230 = vperm.xlu0 %1229, %v1212
        %v1231 = vpop.permute.xlu0 %1230
        %v1234 = vsel %vm442, %v1204, 0
        %v1237 = vsel %vm442, %v1205, 0
        %v1240 = vsel %vm442, %v1206, 0
        %v1243 = vsel %vm442, %v1207, 0
        %1245 = vmatpush.msra.mxu0 0.0
        %1246 = vmatpush.msra.mxu0 0.0
        %1247 = vmatpush.msra.mxu0 0.0
        %1248 = vmatpush.msra.mxu0 0.0
        %1249 = vmatpush.msra.mxu0 0.0
        %1250 = vmatpush.msra.mxu0 0.0
        %1251 = vmatpush.msra.mxu0 0.0
        %1252 = vmatpush.msra.mxu0 0.0
        %1253 = vmatpush.msra.mxu0 %v1201
        %1254 = vmatpush.msra.mxu0 %v1199
        %1255 = vmatpush.msra.mxu0 %v1197
        %1256 = vmatpush.msra.mxu0 %v1195
        %1257 = vmatpush.msra.mxu0 %v1193
        %1258 = vmatpush.msra.mxu0 %v1191
        %1259 = vmatpush.msra.mxu0 %v1189
        %1260 = vmatpush.msra.mxu0 %v1187
        %1261 = vmatmul.f32.gmra.mxu0 %v1234
        %v1262 = vpop.f32.mrf.mxu0
        %v1263 = vadd.f32 %v1216, %v1262
        %1264 = vmatmul.f32.gmra.mxu0 %v1237
        %v1265 = vpop.f32.mrf.mxu0
        %v1266 = vadd.f32 %v1221, %v1265
        %1267 = vmatmul.f32.gmra.mxu0 %v1240
        %v1268 = vpop.f32.mrf.mxu0
        %v1269 = vadd.f32 %v1226, %v1268
        %1270 = vmatmul.f32.gmra.mxu0 %v1243
        %v1271 = vpop.f32.mrf.mxu0
        %v1272 = vadd.f32 %v1231, %v1271
        %1273 = vdwg.mxu0
        %1274 = vmatpush.msra.mxu0 0.0
        %1275 = vmatpush.msra.mxu0 0.0
        %1276 = vmatpush.msra.mxu0 0.0
        %1277 = vmatpush.msra.mxu0 0.0
        %1278 = vmatpush.msra.mxu0 0.0
        %1279 = vmatpush.msra.mxu0 0.0
        %1280 = vmatpush.msra.mxu0 0.0
        %1281 = vmatpush.msra.mxu0 0.0
        %1282 = vmatpush.msra.mxu0 %v1202
        %1283 = vmatpush.msra.mxu0 %v1200
        %1284 = vmatpush.msra.mxu0 %v1198
        %1285 = vmatpush.msra.mxu0 %v1196
        %1286 = vmatpush.msra.mxu0 %v1194
        %1287 = vmatpush.msra.mxu0 %v1192
        %1288 = vmatpush.msra.mxu0 %v1190
        %1289 = vmatpush.msra.mxu0 %v1188
        %1290 = vmatmul.f32.gmra.mxu0 %v1234
        %v1291 = vpop.f32.mrf.mxu0
        %v1292 = vadd.f32 %v1216, %v1291
        %1293 = vmatmul.f32.gmra.mxu0 %v1237
        %v1294 = vpop.f32.mrf.mxu0
        %v1295 = vadd.f32 %v1221, %v1294
        %1296 = vmatmul.f32.gmra.mxu0 %v1240
        %v1297 = vpop.f32.mrf.mxu0
        %v1298 = vadd.f32 %v1226, %v1297
        %1299 = vmatmul.f32.gmra.mxu0 %v1243
        %v1300 = vpop.f32.mrf.mxu0
        %v1301 = vadd.f32 %v1231, %v1300
        %1302 = vdwg.mxu0
        %v1303 = vsub.f32 0.0, %v1263
        %v1304 = vsub.f32 0.0, %v1292
        %v1305 = vsub.f32 0.0, %v1266
        %v1306 = vsub.f32 0.0, %v1295
        %v1307 = vsub.f32 0.0, %v1269
        %v1308 = vsub.f32 0.0, %v1298
        %v1309 = vsub.f32 0.0, %v1272
        %v1310 = vsub.f32 0.0, %v1301
        %v1311 = vmul.f32 %v1303, 1.442695
        %v1312 = vpow.pop %v1311
        %v1313 = vmul.f32 %v1304, 1.442695
        %v1314 = vpow.pop %v1313
        %v1315 = vmul.f32 %v1305, 1.442695
        %v1316 = vpow.pop %v1315
        %v1317 = vmul.f32 %v1306, 1.442695
        %v1318 = vpow.pop %v1317
        %v1319 = vmul.f32 %v1307, 1.442695
        %v1320 = vpow.pop %v1319
        %v1321 = vmul.f32 %v1308, 1.442695
        %v1322 = vpow.pop %v1321
        %v1323 = vmul.f32 %v1309, 1.442695
        %v1324 = vpow.pop %v1323
        %v1325 = vmul.f32 %v1310, 1.442695
        %v1326 = vpow.pop %v1325
        %v1327 = vadd.f32 %v1312, 1.0
        %v1328 = vadd.f32 %v1314, 1.0
        %v1329 = vadd.f32 %v1316, 1.0
        %v1330 = vadd.f32 %v1318, 1.0
        %v1331 = vadd.f32 %v1320, 1.0
        %v1332 = vadd.f32 %v1322, 1.0
        %v1333 = vadd.f32 %v1324, 1.0
        %v1334 = vadd.f32 %v1326, 1.0
        %v1335 = vrcp.pop %v1327
        %v1336 = vmul.f32 %v1327, %v1335
        %v1337 = vsub.f32 1.0, %v1336
        %v1338 = vmul.f32 %v1335, %v1337
        %v1339 = vadd.f32 %v1335, %v1338
        %vm1340 = vweird.f32 %v1327
        %vm1341 = vweird.f32 %v1335
        %vm1342 = vmor %vm1340, %vm1341
        %v1343 = vsel %vm1342, %v1335, %v1339
        %v1344 = vand.u32 2147483647, %v1327
        %vm1345 = vcmp.eq.f32.partialorder %v1344, 8.507059e+37
        %v1346 = vand.u32 %v1327, 2147483648
        %v1347 = vor.u32 1.1754944e-38, %v1346
        %v1348 = vsel %vm1345, %v1347, %v1343
        %v1349 = vrcp.pop %v1328
        %v1350 = vmul.f32 %v1328, %v1349
        %v1351 = vsub.f32 1.0, %v1350
        %v1352 = vmul.f32 %v1349, %v1351
        %v1353 = vadd.f32 %v1349, %v1352
        %vm1354 = vweird.f32 %v1328
        %vm1355 = vweird.f32 %v1349
        %vm1356 = vmor %vm1354, %vm1355
        %v1357 = vsel %vm1356, %v1349, %v1353
        %v1358 = vand.u32 2147483647, %v1328
        %vm1359 = vcmp.eq.f32.partialorder %v1358, 8.507059e+37
        %v1360 = vand.u32 %v1328, 2147483648
        %v1361 = vor.u32 1.1754944e-38, %v1360
        %v1362 = vsel %vm1359, %v1361, %v1357
        %v1363 = vrcp.pop %v1329
        %v1364 = vmul.f32 %v1329, %v1363
        %v1365 = vsub.f32 1.0, %v1364
        %v1366 = vmul.f32 %v1363, %v1365
        %v1367 = vadd.f32 %v1363, %v1366
        %vm1368 = vweird.f32 %v1329
        %vm1369 = vweird.f32 %v1363
        %vm1370 = vmor %vm1368, %vm1369
        %v1371 = vsel %vm1370, %v1363, %v1367
        %v1372 = vand.u32 2147483647, %v1329
        %vm1373 = vcmp.eq.f32.partialorder %v1372, 8.507059e+37
        %v1374 = vand.u32 %v1329, 2147483648
        %v1375 = vor.u32 1.1754944e-38, %v1374
        %v1376 = vsel %vm1373, %v1375, %v1371
        %v1377 = vrcp.pop %v1330
        %v1378 = vmul.f32 %v1330, %v1377
        %v1379 = vsub.f32 1.0, %v1378
        %v1380 = vmul.f32 %v1377, %v1379
        %v1381 = vadd.f32 %v1377, %v1380
        %vm1382 = vweird.f32 %v1330
        %vm1383 = vweird.f32 %v1377
        %vm1384 = vmor %vm1382, %vm1383
        %v1385 = vsel %vm1384, %v1377, %v1381
        %v1386 = vand.u32 2147483647, %v1330
        %vm1387 = vcmp.eq.f32.partialorder %v1386, 8.507059e+37
        %v1388 = vand.u32 %v1330, 2147483648
        %v1389 = vor.u32 1.1754944e-38, %v1388
        %v1390 = vsel %vm1387, %v1389, %v1385
        %v1391 = vrcp.pop %v1331
        %v1392 = vmul.f32 %v1331, %v1391
        %v1393 = vsub.f32 1.0, %v1392
        %v1394 = vmul.f32 %v1391, %v1393
        %v1395 = vadd.f32 %v1391, %v1394
        %vm1396 = vweird.f32 %v1331
        %vm1397 = vweird.f32 %v1391
        %vm1398 = vmor %vm1396, %vm1397
        %v1399 = vsel %vm1398, %v1391, %v1395
        %v1400 = vand.u32 2147483647, %v1331
        %vm1401 = vcmp.eq.f32.partialorder %v1400, 8.507059e+37
        %v1402 = vand.u32 %v1331, 2147483648
        %v1403 = vor.u32 1.1754944e-38, %v1402
        %v1404 = vsel %vm1401, %v1403, %v1399
        %v1405 = vrcp.pop %v1332
        %v1406 = vmul.f32 %v1332, %v1405
        %v1407 = vsub.f32 1.0, %v1406
        %v1408 = vmul.f32 %v1405, %v1407
        %v1409 = vadd.f32 %v1405, %v1408
        %vm1410 = vweird.f32 %v1332
        %vm1411 = vweird.f32 %v1405
        %vm1412 = vmor %vm1410, %vm1411
        %v1413 = vsel %vm1412, %v1405, %v1409
        %v1414 = vand.u32 2147483647, %v1332
        %vm1415 = vcmp.eq.f32.partialorder %v1414, 8.507059e+37
        %v1416 = vand.u32 %v1332, 2147483648
        %v1417 = vor.u32 1.1754944e-38, %v1416
        %v1418 = vsel %vm1415, %v1417, %v1413
        %v1419 = vrcp.pop %v1333
        %v1420 = vmul.f32 %v1333, %v1419
        %v1421 = vsub.f32 1.0, %v1420
        %v1422 = vmul.f32 %v1419, %v1421
        %v1423 = vadd.f32 %v1419, %v1422
        %vm1424 = vweird.f32 %v1333
        %vm1425 = vweird.f32 %v1419
        %vm1426 = vmor %vm1424, %vm1425
        %v1427 = vsel %vm1426, %v1419, %v1423
        %v1428 = vand.u32 2147483647, %v1333
        %vm1429 = vcmp.eq.f32.partialorder %v1428, 8.507059e+37
        %v1430 = vand.u32 %v1333, 2147483648
        %v1431 = vor.u32 1.1754944e-38, %v1430
        %v1432 = vsel %vm1429, %v1431, %v1427
        %v1433 = vrcp.pop %v1334
        %v1434 = vmul.f32 %v1334, %v1433
        %v1435 = vsub.f32 1.0, %v1434
        %v1436 = vmul.f32 %v1433, %v1435
        %v1437 = vadd.f32 %v1433, %v1436
        %vm1438 = vweird.f32 %v1334
        %vm1439 = vweird.f32 %v1433
        %vm1440 = vmor %vm1438, %vm1439
        %v1441 = vsel %vm1440, %v1433, %v1437
        %v1442 = vand.u32 2147483647, %v1334
        %vm1443 = vcmp.eq.f32.partialorder %v1442, 8.507059e+37
        %v1444 = vand.u32 %v1334, 2147483648
        %v1445 = vor.u32 1.1754944e-38, %v1444
        %v1446 = vsel %vm1443, %v1445, %v1441
        %1447 = vst [vmem:[%s190] sm:$0xff] %v1348
        %1448 = vst [vmem:[%s190 + $0x8] sm:$0xff] %v1362
        %1449 = vst [vmem:[%s190 + $0x10] sm:$0xff] %v1376
        %1450 = vst [vmem:[%s190 + $0x18] sm:$0xff] %v1390
        %1451 = vst [vmem:[%s190 + $0x20] sm:$0xff] %v1404
        %1452 = vst [vmem:[%s190 + $0x28] sm:$0xff] %v1418
        %1453 = vst [vmem:[%s190 + $0x30] sm:$0xff] %v1432
        %1454 = vst [vmem:[%s190 + $0x38] sm:$0xff] %v1446
        %s1455 = sand.u32 %s96, 1
        %s1456 = scalar_lea.sflag [#allocation4], %s1455
        %s1457 = sand.u32 %s96, 1
        %s1458 = smul.addr %s1457, 64
        %s1459 = scalar_lea.vmem [#allocation5], %s1458
        // Predicated region
        $region37: #{tpu_custom_call.1} parent=31 // pred_check
          %p1460 = pneg %p106
        $region38: #{tpu_custom_call.1} parent=31 // pred_check_branch
          %1462 = sbr.rel (%p1460) target = $region40
        $region39: #{tpu_custom_call.1} parent=31 // pred_region
          %s1463 = smul.u32 2, %s20
          %1465 = vsyncadd %s1456, 0
          %s1466 = smul.addr %s1463, 8
          %s1467 = scalar_lea.hbm %s3, %s1466
          %s1468 = sshll.u32 %s1459, 4
          %s1469 = int_to_ptr.vmem [resolvable:$true] %s1468
          %s1470 = sshll.u32 %s1467, 4
          %s1471 = int_to_ptr.hbm [resolvable:$true] %s1470
          %1476 = dma.vmem_to_hbm [thread:$0]  %s1469, 1024, %s1471, %s1456, 256, 512, 16
        $region40: #{tpu_custom_call.1} parent=31 // pred_fallthru
          _
      $region32: #{tpu_custom_call.1} parent=5 // pred_fallthru
        _
      %p1477 = scmp.le.s32.totalorder 2, %s15
      // Predicated region
      $region41: #{tpu_custom_call.1} parent=5 // pred_check
        %p1478 = pneg %p1477
      $region42: #{tpu_custom_call.1} parent=5 // pred_check_branch
        %1480 = sbr.rel (%p1478) target = $region44
      $region43: #{tpu_custom_call.1} parent=5 // pred_region
        %s1481 = ssub.s32 %s15, 2
        // Predicated region
        $region45: #{tpu_custom_call.1} parent=43 // pred_check
          %p1482 = pneg %p112
        $region46: #{tpu_custom_call.1} parent=43 // pred_check_branch
          %1484 = sbr.rel (%p1482) target = $region48
        $region47: #{tpu_custom_call.1} parent=43 // pred_region
          %s1485 = sand.u32 %s97, 1
          %s1486 = scalar_lea.sflag [#allocation4], %s1485
          %s1487 = sand.u32 %s97, 1
          %s1488 = smul.addr %s1487, 64
          %s1489 = scalar_lea.vmem [#allocation5], %s1488
          %1491 = dma.done %s1486, 1024
        $region48: #{tpu_custom_call.1} parent=43 // pred_fallthru
          _
      $region44: #{tpu_custom_call.1} parent=5 // pred_fallthru
        _
    $region6: #{tpu_custom_call.1} parent=1 // loop_footer
      %s19 = sadd.s32 1, %s15
    $region7: #{tpu_custom_call.1} parent=1 // loop_footer_branch
      %14 = sbr.rel target = $region3
    $region8: #{tpu_custom_call.1} parent=1 // loop_exit
      _
    %1492 = vsyncpa [#allocation3], 1
    %s1493 = scalar_lea.sflag [#allocation3], 1
    %1494 = vsyncpa %s1493, 1
    %1495 = vsyncpa [#allocation4], 1
    %s1496 = scalar_lea.sflag [#allocation4], 1
    %1497 = vsyncpa %s1496, 1

</llo_original>
